<compile_context>
chip_gen: v6e
topology: v6e:2x2x1
jax: 0.10.0
libtpu: 0.0.40
codegen_flags: <defaults>
</compile_context>

<pallas_src>
import math

import jax
import jax.numpy as jnp
from jax.experimental import pallas as pl
from jax.experimental.pallas import tpu as pltpu

# ---------------- model dims (small, consistent with the module) -------------
B = 2          # batch
T = 8          # target (decoder) sequence length
S = 16         # source (encoder) sequence length
D_MODEL = 32   # embedding dim
NUM_HEADS = 4
D_HEAD = D_MODEL // NUM_HEADS
D_FF = 64
LN_EPS = 1e-5  # PyTorch nn.LayerNorm default
NEG_INF = -1e9

N_Q = B * T            # folded query rows
N_KV = B * S           # folded encoder rows
HN = NUM_HEADS * N_Q   # head-stacked query rows

# ---- weight-slab row offsets (bf16 slab, 128 lanes) ----
R_WQKV1, R_WQ2, R_WKV2, R_WO1, R_WO2, R_WFF1, R_WFF2 = 0, 32, 64, 96, 128, 160, 192
W_SLAB_ROWS = 256
# ---- vector-slab row indices (f32 slab, 128 lanes) ----
(ROW_G1, ROW_B1, ROW_G2, ROW_B2, ROW_G3, ROW_B3,
 ROW_BQKV1, ROW_BQ2, ROW_BKV2, ROW_BO1, ROW_BO2, ROW_BF1, ROW_BF2) = range(13)
V_SLAB_ROWS = 16


# ------------------------------- Pallas kernel -------------------------------
def decoder_block_kernel(x_ref, enc_ref, stat_ref, w_ref, vec_ref, out_ref):
    D = D_MODEL
    x = x_ref[...]                                   # (N_Q, D)  f32
    enc = enc_ref[...]                               # (N_KV, D) bf16

    # static attention slab: [ head-mask | self-bias | cross-bias ]
    headmask = stat_ref[:, 0:D]                      # (HN, D)    f32 0/1 per-head lane select
    tbias = stat_ref[:, D:D + N_Q]                   # (HN, N_Q)  additive bias (0 / -1e9)
    sbias = stat_ref[:, D + N_Q:D + N_Q + N_KV]      # (HN, N_KV)

    def vec(row, width):                             # (1, width) f32 bias/LN row
        return vec_ref[row:row + 1, 0:width]

    def bdot(a, b_bf16):                             # bf16 operands, f32 MXU accumulation
        return jnp.dot(a.astype(jnp.bfloat16), b_bf16,
                       preferred_element_type=jnp.float32)

    def layer_norm(v, g_row):                        # f32 VPU/EUP math (v5e-safe)
        mu = jnp.mean(v, axis=-1, keepdims=True)
        var = jnp.mean((v - mu) ** 2, axis=-1, keepdims=True)
        return (v - mu) * jax.lax.rsqrt(var + LN_EPS) * vec(g_row, D) + vec(g_row + 1, D)

    def attention(q, k_bf, v_bf, bias):
        # q: (N_Q, D) f32, already scaled by 1/sqrt(d_head) via weight folding.
        # k_bf / v_bf: (Nk, D) bf16.  bias: (HN, Nk) additive f32.
        # Tile queries H x on sublanes and keep only head-h lanes per row block, so one
        # wide matmul gives the exact per-head scores (no cross-head garbage in softmax).
        qb = (jnp.concatenate([q] * NUM_HEADS, axis=0) * headmask).astype(jnp.bfloat16)
        s = jnp.einsum('nd,md->nm', qb, k_bf,
                       preferred_element_type=jnp.float32) + bias       # (HN, Nk)
        s = s - jnp.max(s, axis=-1, keepdims=True)
        p = jnp.exp(s)
        p = p * pl.reciprocal(jnp.sum(p, axis=-1, keepdims=True), approx=True)
        o = jnp.dot(p.astype(jnp.bfloat16), v_bf,
                    preferred_element_type=jnp.float32) * headmask      # (HN, D)
        acc = o[0:N_Q]                                                  # head-merge -> (N_Q, D)
        for h in range(1, NUM_HEADS):
            acc = acc + o[h * N_Q:(h + 1) * N_Q]
        return acc                                                      # heads concat on lanes

    # ---- residual 1: pre-norm self-attention (fused QKV) ----
    xn = layer_norm(x, ROW_G1)
    qkv = bdot(xn, w_ref[R_WQKV1:R_WQKV1 + 32, 0:3 * D]) + vec(ROW_BQKV1, 3 * D)  # (N_Q, 3D)
    q, k, v = qkv[:, 0:D], qkv[:, D:2 * D], qkv[:, 2 * D:3 * D]
    a1 = attention(q, k.astype(jnp.bfloat16), v.astype(jnp.bfloat16), tbias)
    x = x + bdot(a1, w_ref[R_WO1:R_WO1 + 32, 0:D]) + vec(ROW_BO1, D)

    # ---- residual 2: pre-norm cross-attention (fused KV on encoder_out) ----
    xn = layer_norm(x, ROW_G2)
    q2 = bdot(xn, w_ref[R_WQ2:R_WQ2 + 32, 0:D]) + vec(ROW_BQ2, D)
    kv2 = bdot(enc, w_ref[R_WKV2:R_WKV2 + 32, 0:2 * D]) + vec(ROW_BKV2, 2 * D)    # (N_KV, 2D)
    a2 = attention(q2, kv2[:, 0:D].astype(jnp.bfloat16),
                   kv2[:, D:2 * D].astype(jnp.bfloat16), sbias)
    x = x + bdot(a2, w_ref[R_WO2:R_WO2 + 32, 0:D]) + vec(ROW_BO2, D)

    # ---- residual 3: pre-norm position-wise FFN ----
    xn = layer_norm(x, ROW_G3)
    hcc = jnp.maximum(bdot(xn, w_ref[R_WFF1:R_WFF1 + 32, 0:D_FF]) + vec(ROW_BF1, D_FF), 0.0)
    x = x + bdot(hcc, w_ref[R_WFF2:R_WFF2 + 64, 0:D]) + vec(ROW_BF2, D)

    # TODO(synk): dropout (dr_rate > 0) omitted — module is constructed with dr_rate = 0.
    out_ref[...] = x


# ----------------------- one-time parameter / mask prep -----------------------
def prepare_params(params, tgt_mask, src_tgt_mask):
    """Host-side, once per (params, masks): pack slabs, fold scale, build biases."""
    (g1, b1, wq1, bq1, wk1, bk1, wv1, bv1, wo1, bo1,
     g2, b2, wq2, bq2, wk2, bk2, wv2, bv2, wo2, bo2,
     g3, b3, w1, fb1, w2, fb2) = params

    inv = jnp.float32(1.0 / math.sqrt(D_HEAD))

    # bf16 weight slab (256, 128)
    wslab = jnp.zeros((W_SLAB_ROWS, 128), jnp.bfloat16)

    def place(slab, row, w):
        r, c = w.shape
        return slab.at[row:row + r, 0:c].set(w.astype(jnp.bfloat16))

    wslab = place(wslab, R_WQKV1, jnp.concatenate([wq1 * inv, wk1, wv1], axis=1))
    wslab = place(wslab, R_WQ2, wq2 * inv)
    wslab = place(wslab, R_WKV2, jnp.concatenate([wk2, wv2], axis=1))
    wslab = place(wslab, R_WO1, wo1)
    wslab = place(wslab, R_WO2, wo2)
    wslab = place(wslab, R_WFF1, w1)
    wslab = place(wslab, R_WFF2, w2)

    # f32 vector slab (16, 128): LN params + biases, one row each
    vslab = jnp.zeros((V_SLAB_ROWS, 128), jnp.float32)
    rows = [g1, b1, g2, b2, g3, b3,
            jnp.concatenate([bq1 * inv, bk1, bv1], axis=1),
            bq2 * inv,
            jnp.concatenate([bk2, bv2], axis=1),
            bo1, bo2, fb1, fb2]
    for i, vrow in enumerate(rows):
        vrow = vrow.reshape(1, -1)
        vslab = vslab.at[i, 0:vrow.shape[1]].set(vrow[0])

    # f32 static attention slab (HN, 128): [ head lane-mask | self bias | cross bias ]
    hm = jnp.zeros((NUM_HEADS, D_MODEL), jnp.float32)
    for h in range(NUM_HEADS):
        hm = hm.at[h, h * D_HEAD:(h + 1) * D_HEAD].set(1.0)
    hm = jnp.repeat(hm, N_Q, axis=0)                              # (HN, D), row h*N_Q + i

    def block_bias(mask, tk):
        # (B,1,Tq,tk) 0/1 mask -> (HN, B*tk) additive bias; cross-batch pairs masked.
        keep = (mask[:, 0] != 0).astype(jnp.float32)              # (B, T, tk)
        eye = jnp.eye(B, dtype=jnp.float32)
        blk = jnp.einsum('bc,bqk->bqck', eye, keep).reshape(B * T, B * tk)
        bias = jnp.where(blk > 0.5, 0.0, NEG_INF).astype(jnp.float32)
        return jnp.tile(bias, (NUM_HEADS, 1))                     # same bias for every head

    tbias = block_bias(tgt_mask, T)                               # (HN, N_Q)
    sbias = block_bias(src_tgt_mask, S)                           # (HN, N_KV)

    stat = jnp.zeros((HN, 128), jnp.float32)
    stat = stat.at[:, 0:D_MODEL].set(hm)
    stat = stat.at[:, D_MODEL:D_MODEL + N_Q].set(tbias)
    stat = stat.at[:, D_MODEL + N_Q:D_MODEL + N_Q + N_KV].set(sbias)

    return stat, wslab, vslab


# --------------------------------- hot path -----------------------------------
@jax.jit
def decoder_block_forward(tgt, encoder_out, stat_slab, w_slab, vec_slab):
    x = tgt.reshape(N_Q, D_MODEL)
    enc = encoder_out.reshape(N_KV, D_MODEL).astype(jnp.bfloat16)   # K/V input only
    vmem = pl.BlockSpec(memory_space=pltpu.MemorySpace.VMEM)
    out = pl.pallas_call(
        decoder_block_kernel,
        out_shape=jax.ShapeDtypeStruct((N_Q, D_MODEL), jnp.float32),
        in_specs=[vmem] * 5,
        out_specs=vmem,
        cost_estimate=pl.CostEstimate(flops=852_000, transcendentals=3_250,
                                      bytes_accessed=112_640),
    )(x, enc, stat_slab, w_slab, vec_slab)
    return out.reshape(B, T, D_MODEL)


# --------------------------- deterministic params ----------------------------
def init_params(key):
    ks = list(jax.random.split(key, 32))
    it = iter(ks)

    def w(shape, scale=0.02):
        return (scale * jax.random.normal(next(it), shape)).astype(jnp.float32)

    def ln_pair():
        g = (1.0 + 0.1 * jax.random.normal(next(it), (1, D_MODEL))).astype(jnp.float32)
        b = (0.1 * jax.random.normal(next(it), (1, D_MODEL))).astype(jnp.float32)
        return [g, b]

    params = []
    for _ in range(2):                      # self-attn, cross-attn blocks
        params += ln_pair()
        for _ in range(4):                  # Wq,bq,Wk,bk,Wv,bv,Wo,bo (stored as (in,out) = W^T)
            params += [w((D_MODEL, D_MODEL)), w((1, D_MODEL))]
    params += ln_pair()                     # FFN block
    params += [w((D_MODEL, D_FF)), w((1, D_FF)), w((D_FF, D_MODEL)), w((1, D_MODEL))]
    return params


# ------------------------------ JAX reference --------------------------------
def ref_decoder_block(tgt, enc, tmask, smask, params):
    (g1, b1, wq1, bq1, wk1, bk1, wv1, bv1, wo1, bo1,
     g2, b2, wq2, bq2, wk2, bk2, wv2, bv2, wo2, bo2,
     g3, b3, w1, fb1, w2, fb2) = params

    def ln(x, g, b):
        mu = x.mean(-1, keepdims=True)
        var = ((x - mu) ** 2).mean(-1, keepdims=True)
        return (x - mu) / jnp.sqrt(var + LN_EPS) * g + b

    def mha(q_in, kv_in, mask, wq, bq, wk, bk, wv, bv, wo, bo):
        Bq, Tq, _ = q_in.shape
        Tk = kv_in.shape[1]
        q = (q_in @ wq + bq).reshape(Bq, Tq, NUM_HEADS, D_HEAD).transpose(0, 2, 1, 3)
        k = (kv_in @ wk + bk).reshape(Bq, Tk, NUM_HEADS, D_HEAD).transpose(0, 2, 1, 3)
        v = (kv_in @ wv + bv).reshape(Bq, Tk, NUM_HEADS, D_HEAD).transpose(0, 2, 1, 3)
        s = jnp.einsum("bhtd,bhsd->bhts", q, k) / math.sqrt(D_HEAD)
        s = jnp.where(mask == 0, -1e9, s)
        p = jax.nn.softmax(s, axis=-1)
        o = jnp.einsum("bhts,bhsd->bhtd", p, v).transpose(0, 2, 1, 3).reshape(Bq, Tq, -1)
        return o @ wo + bo

    x = tgt
    xn = ln(x, g1, b1)
    x = x + mha(xn, xn, tmask, wq1, bq1, wk1, bk1, wv1, bv1, wo1, bo1)
    xn = ln(x, g2, b2)
    x = x + mha(xn, enc, smask, wq2, bq2, wk2, bk2, wv2, bv2, wo2, bo2)
    xn = ln(x, g3, b3)
    x = x + jnp.maximum(xn @ w1 + fb1, 0.0) @ w2 + fb2
    return x


# ----------------------------------- main -------------------------------------
if __name__ == "__main__":
    key = jax.random.PRNGKey(0)
    k_tgt, k_enc, k_par = jax.random.split(key, 3)

    tgt = jax.random.normal(k_tgt, (B, T, D_MODEL), dtype=jnp.float32)
    encoder_out = jax.random.normal(k_enc, (B, S, D_MODEL), dtype=jnp.float32)

    # causal target mask (B,1,T,T) and a source-target mask with some padding
    tgt_mask = jnp.broadcast_to(
        jnp.tril(jnp.ones((T, T), jnp.int32))[None, None], (B, 1, T, T)
    ).astype(jnp.int32)
    src_tgt_mask = jnp.ones((B, 1, T, S), jnp.int32)
    src_tgt_mask = src_tgt_mask.at[1, :, :, S - 3:].set(0)   # pad last 3 src tokens of item 1

    params = init_params(k_par)

    # one-time prep (weight packing / scale folding / mask -> additive bias), hot path excluded
    stat_slab, w_slab, vec_slab = prepare_params(params, tgt_mask, src_tgt_mask)

    out = decoder_block_forward(tgt, encoder_out, stat_slab, w_slab, vec_slab)
    out = jax.block_until_ready(out)

    ref = ref_decoder_block(tgt, encoder_out, tgt_mask, src_tgt_mask, params)
    assert out.shape == (B, T, D_MODEL)
    assert jnp.allclose(out, ref, rtol=1e-2, atol=1e-2), (
        f"max abs err = {jnp.max(jnp.abs(out - ref))}")

    print("KERNEL_OK")
</pallas_src>

<mosaic_0001>
module attributes {stable_mosaic.version = 11 : i64} {
  func.func @decoder_block_kernel(%arg0: memref<16x32xf32, #tpu.memory_space<vmem>>, %arg1: memref<32x32xbf16, #tpu.memory_space<vmem>>, %arg2: memref<64x128xf32, #tpu.memory_space<vmem>>, %arg3: memref<256x128xbf16, #tpu.memory_space<vmem>>, %arg4: memref<16x128xf32, #tpu.memory_space<vmem>>, %arg5: memref<16x32xf32, #tpu.memory_space<vmem>>) attributes {dimension_semantics = [], scalar_prefetch = 0 : i64, scratch_operands = 0 : i64, tpu.core_type = #tpu.core_type<tc>} {
    %c0 = arith.constant 0 : index
    %c0_0 = arith.constant 0 : index
    %0 = vector.load %arg0[%c0, %c0_0] : memref<16x32xf32, #tpu.memory_space<vmem>>, vector<16x32xf32>
    %c0_1 = arith.constant 0 : index
    %c0_2 = arith.constant 0 : index
    %1 = vector.load %arg1[%c0_1, %c0_2] : memref<32x32xbf16, #tpu.memory_space<vmem>>, vector<32x32xbf16>
    %c0_3 = arith.constant 0 : index
    %c0_4 = arith.constant 0 : index
    %2 = vector.load %arg2[%c0_3, %c0_4] : memref<64x128xf32, #tpu.memory_space<vmem>>, vector<64x32xf32>
    %c0_5 = arith.constant 0 : index
    %c32 = arith.constant 32 : index
    %3 = vector.load %arg2[%c0_5, %c32] : memref<64x128xf32, #tpu.memory_space<vmem>>, vector<64x16xf32>
    %c0_6 = arith.constant 0 : index
    %c48 = arith.constant 48 : index
    %4 = vector.load %arg2[%c0_6, %c48] : memref<64x128xf32, #tpu.memory_space<vmem>>, vector<64x32xf32>
    %cst = arith.constant dense<0.000000e+00> : vector<16xf32>
    %5 = vector.multi_reduction <add>, %0, %cst [1] : vector<16x32xf32> to vector<16xf32>
    %6 = vector.shape_cast %5 : vector<16xf32> to vector<16x1xf32>
    %cst_7 = arith.constant 3.200000e+01 : f32
    %7 = vector.broadcast %cst_7 : f32 to vector<16x1xf32>
    %8 = arith.divf %6, %7 : vector<16x1xf32>
    %9 = vector.broadcast %8 : vector<16x1xf32> to vector<16x32xf32>
    %10 = arith.subf %0, %9 : vector<16x32xf32>
    %11 = arith.mulf %10, %10 : vector<16x32xf32>
    %cst_8 = arith.constant dense<0.000000e+00> : vector<16xf32>
    %12 = vector.multi_reduction <add>, %11, %cst_8 [1] : vector<16x32xf32> to vector<16xf32>
    %13 = vector.shape_cast %12 : vector<16xf32> to vector<16x1xf32>
    %cst_9 = arith.constant 3.200000e+01 : f32
    %14 = vector.broadcast %cst_9 : f32 to vector<16x1xf32>
    %15 = arith.divf %13, %14 : vector<16x1xf32>
    %16 = vector.broadcast %8 : vector<16x1xf32> to vector<16x32xf32>
    %17 = arith.subf %0, %16 : vector<16x32xf32>
    %cst_10 = arith.constant 9.99999974E-6 : f32
    %18 = vector.broadcast %cst_10 : f32 to vector<16x1xf32>
    %19 = arith.addf %15, %18 : vector<16x1xf32>
    %20 = math.rsqrt %19 : vector<16x1xf32>
    %21 = vector.broadcast %20 : vector<16x1xf32> to vector<16x32xf32>
    %22 = arith.mulf %17, %21 : vector<16x32xf32>
    %c0_11 = arith.constant 0 : index
    %c0_12 = arith.constant 0 : index
    %23 = vector.load %arg4[%c0_11, %c0_12] : memref<16x128xf32, #tpu.memory_space<vmem>>, vector<1x32xf32>
    %24 = vector.broadcast %23 : vector<1x32xf32> to vector<16x32xf32>
    %25 = arith.mulf %22, %24 : vector<16x32xf32>
    %c1 = arith.constant 1 : index
    %c0_13 = arith.constant 0 : index
    %26 = vector.load %arg4[%c1, %c0_13] : memref<16x128xf32, #tpu.memory_space<vmem>>, vector<1x32xf32>
    %27 = vector.broadcast %26 : vector<1x32xf32> to vector<16x32xf32>
    %28 = arith.addf %25, %27 : vector<16x32xf32>
    %c0_14 = arith.constant 0 : index
    %c0_15 = arith.constant 0 : index
    %29 = vector.load %arg3[%c0_14, %c0_15] : memref<256x128xbf16, #tpu.memory_space<vmem>>, vector<32x96xbf16>
    %30 = arith.truncf %28 : vector<16x32xf32> to vector<16x32xbf16>
    %cst_16 = arith.constant dense<0.000000e+00> : vector<16x96xf32>
    %31 = tpu.matmul %30, %29, %cst_16 {dimension_numbers = #tpu.dot_dimension_numbers<[1], [0], [0], [1], [0, 0, 1, 1], [], []>} : vector<16x32xbf16>, vector<32x96xbf16>, vector<16x96xf32> -> vector<16x96xf32>
    %c6 = arith.constant 6 : index
    %c0_17 = arith.constant 0 : index
    %32 = vector.load %arg4[%c6, %c0_17] : memref<16x128xf32, #tpu.memory_space<vmem>>, vector<1x96xf32>
    %33 = vector.broadcast %32 : vector<1x96xf32> to vector<16x96xf32>
    %34 = arith.addf %31, %33 : vector<16x96xf32>
    %35 = vector.extract_strided_slice %34 {offsets = [0, 0], sizes = [16, 32], strides = [1, 1]} : vector<16x96xf32> to vector<16x32xf32>
    %36 = vector.extract_strided_slice %34 {offsets = [0, 32], sizes = [16, 32], strides = [1, 1]} : vector<16x96xf32> to vector<16x32xf32>
    %37 = vector.extract_strided_slice %34 {offsets = [0, 64], sizes = [16, 32], strides = [1, 1]} : vector<16x96xf32> to vector<16x32xf32>
    %38 = arith.truncf %36 : vector<16x32xf32> to vector<16x32xbf16>
    %39 = arith.truncf %37 : vector<16x32xf32> to vector<16x32xbf16>
    %40 = tpu.concatenate %35, %35, %35, %35 in 0 : vector<16x32xf32>, vector<16x32xf32>, vector<16x32xf32>, vector<16x32xf32> -> vector<64x32xf32>
    %41 = arith.mulf %40, %2 : vector<64x32xf32>
    %42 = arith.truncf %41 : vector<64x32xf32> to vector<64x32xbf16>
    "tpu.trace_start"() <{level = 10 : i32, message = "nd,md->nm"}> : () -> ()
    %cst_18 = arith.constant dense<0.000000e+00> : vector<64x16xf32>
    %43 = tpu.matmul %42, %38, %cst_18 {dimension_numbers = #tpu.dot_dimension_numbers<[1], [1], [0], [0], [0, 0, 1, 0], [], []>} : vector<64x32xbf16>, vector<16x32xbf16>, vector<64x16xf32> -> vector<64x16xf32>
    "tpu.trace_stop"() : () -> ()
    %44 = arith.addf %43, %3 : vector<64x16xf32>
    %cst_19 = arith.constant dense<0xFF800000> : vector<64xf32>
    %45 = vector.multi_reduction <maximumf>, %44, %cst_19 [1] : vector<64x16xf32> to vector<64xf32>
    %46 = vector.shape_cast %45 : vector<64xf32> to vector<64x1xf32>
    %47 = vector.broadcast %46 : vector<64x1xf32> to vector<64x16xf32>
    %48 = arith.subf %44, %47 : vector<64x16xf32>
    %49 = math.exp %48 : vector<64x16xf32>
    %cst_20 = arith.constant dense<0.000000e+00> : vector<64xf32>
    %50 = vector.multi_reduction <add>, %49, %cst_20 [1] : vector<64x16xf32> to vector<64xf32>
    %51 = vector.shape_cast %50 : vector<64xf32> to vector<64x1xf32>
    %52 = tpu.reciprocal %51 {approx = true} : vector<64x1xf32> -> vector<64x1xf32>
    %53 = vector.broadcast %52 : vector<64x1xf32> to vector<64x16xf32>
    %54 = arith.mulf %49, %53 : vector<64x16xf32>
    %55 = arith.truncf %54 : vector<64x16xf32> to vector<64x16xbf16>
    %cst_21 = arith.constant dense<0.000000e+00> : vector<64x32xf32>
    %56 = tpu.matmul %55, %39, %cst_21 {dimension_numbers = #tpu.dot_dimension_numbers<[1], [0], [0], [1], [0, 0, 1, 1], [], []>} : vector<64x16xbf16>, vector<16x32xbf16>, vector<64x32xf32> -> vector<64x32xf32>
    %57 = arith.mulf %56, %2 : vector<64x32xf32>
    %58 = vector.extract_strided_slice %57 {offsets = [0, 0], sizes = [16, 32], strides = [1, 1]} : vector<64x32xf32> to vector<16x32xf32>
    %59 = vector.extract_strided_slice %57 {offsets = [16, 0], sizes = [16, 32], strides = [1, 1]} : vector<64x32xf32> to vector<16x32xf32>
    %60 = arith.addf %58, %59 : vector<16x32xf32>
    %61 = vector.extract_strided_slice %57 {offsets = [32, 0], sizes = [16, 32], strides = [1, 1]} : vector<64x32xf32> to vector<16x32xf32>
    %62 = arith.addf %60, %61 : vector<16x32xf32>
    %63 = vector.extract_strided_slice %57 {offsets = [48, 0], sizes = [16, 32], strides = [1, 1]} : vector<64x32xf32> to vector<16x32xf32>
    %64 = arith.addf %62, %63 : vector<16x32xf32>
    %c96 = arith.constant 96 : index
    %c0_22 = arith.constant 0 : index
    %65 = vector.load %arg3[%c96, %c0_22] : memref<256x128xbf16, #tpu.memory_space<vmem>>, vector<32x32xbf16>
    %66 = arith.truncf %64 : vector<16x32xf32> to vector<16x32xbf16>
    %cst_23 = arith.constant dense<0.000000e+00> : vector<16x32xf32>
    %67 = tpu.matmul %66, %65, %cst_23 {dimension_numbers = #tpu.dot_dimension_numbers<[1], [0], [0], [1], [0, 0, 1, 1], [], []>} : vector<16x32xbf16>, vector<32x32xbf16>, vector<16x32xf32> -> vector<16x32xf32>
    %68 = arith.addf %0, %67 : vector<16x32xf32>
    %c9 = arith.constant 9 : index
    %c0_24 = arith.constant 0 : index
    %69 = vector.load %arg4[%c9, %c0_24] : memref<16x128xf32, #tpu.memory_space<vmem>>, vector<1x32xf32>
    %70 = vector.broadcast %69 : vector<1x32xf32> to vector<16x32xf32>
    %71 = arith.addf %68, %70 : vector<16x32xf32>
    %cst_25 = arith.constant dense<0.000000e+00> : vector<16xf32>
    %72 = vector.multi_reduction <add>, %71, %cst_25 [1] : vector<16x32xf32> to vector<16xf32>
    %73 = vector.shape_cast %72 : vector<16xf32> to vector<16x1xf32>
    %cst_26 = arith.constant 3.200000e+01 : f32
    %74 = vector.broadcast %cst_26 : f32 to vector<16x1xf32>
    %75 = arith.divf %73, %74 : vector<16x1xf32>
    %76 = vector.broadcast %75 : vector<16x1xf32> to vector<16x32xf32>
    %77 = arith.subf %71, %76 : vector<16x32xf32>
    %78 = arith.mulf %77, %77 : vector<16x32xf32>
    %cst_27 = arith.constant dense<0.000000e+00> : vector<16xf32>
    %79 = vector.multi_reduction <add>, %78, %cst_27 [1] : vector<16x32xf32> to vector<16xf32>
    %80 = vector.shape_cast %79 : vector<16xf32> to vector<16x1xf32>
    %cst_28 = arith.constant 3.200000e+01 : f32
    %81 = vector.broadcast %cst_28 : f32 to vector<16x1xf32>
    %82 = arith.divf %80, %81 : vector<16x1xf32>
    %83 = vector.broadcast %75 : vector<16x1xf32> to vector<16x32xf32>
    %84 = arith.subf %71, %83 : vector<16x32xf32>
    %cst_29 = arith.constant 9.99999974E-6 : f32
    %85 = vector.broadcast %cst_29 : f32 to vector<16x1xf32>
    %86 = arith.addf %82, %85 : vector<16x1xf32>
    %87 = math.rsqrt %86 : vector<16x1xf32>
    %88 = vector.broadcast %87 : vector<16x1xf32> to vector<16x32xf32>
    %89 = arith.mulf %84, %88 : vector<16x32xf32>
    %c2 = arith.constant 2 : index
    %c0_30 = arith.constant 0 : index
    %90 = vector.load %arg4[%c2, %c0_30] : memref<16x128xf32, #tpu.memory_space<vmem>>, vector<1x32xf32>
    %91 = vector.broadcast %90 : vector<1x32xf32> to vector<16x32xf32>
    %92 = arith.mulf %89, %91 : vector<16x32xf32>
    %c3 = arith.constant 3 : index
    %c0_31 = arith.constant 0 : index
    %93 = vector.load %arg4[%c3, %c0_31] : memref<16x128xf32, #tpu.memory_space<vmem>>, vector<1x32xf32>
    %94 = vector.broadcast %93 : vector<1x32xf32> to vector<16x32xf32>
    %95 = arith.addf %92, %94 : vector<16x32xf32>
    %c32_32 = arith.constant 32 : index
    %c0_33 = arith.constant 0 : index
    %96 = vector.load %arg3[%c32_32, %c0_33] : memref<256x128xbf16, #tpu.memory_space<vmem>>, vector<32x32xbf16>
    %97 = arith.truncf %95 : vector<16x32xf32> to vector<16x32xbf16>
    %cst_34 = arith.constant dense<0.000000e+00> : vector<16x32xf32>
    %98 = tpu.matmul %97, %96, %cst_34 {dimension_numbers = #tpu.dot_dimension_numbers<[1], [0], [0], [1], [0, 0, 1, 1], [], []>} : vector<16x32xbf16>, vector<32x32xbf16>, vector<16x32xf32> -> vector<16x32xf32>
    %c7 = arith.constant 7 : index
    %c0_35 = arith.constant 0 : index
    %99 = vector.load %arg4[%c7, %c0_35] : memref<16x128xf32, #tpu.memory_space<vmem>>, vector<1x32xf32>
    %100 = vector.broadcast %99 : vector<1x32xf32> to vector<16x32xf32>
    %101 = arith.addf %98, %100 : vector<16x32xf32>
    %c64 = arith.constant 64 : index
    %c0_36 = arith.constant 0 : index
    %102 = vector.load %arg3[%c64, %c0_36] : memref<256x128xbf16, #tpu.memory_space<vmem>>, vector<32x64xbf16>
    %cst_37 = arith.constant dense<0.000000e+00> : vector<32x64xf32>
    %103 = tpu.matmul %1, %102, %cst_37 {dimension_numbers = #tpu.dot_dimension_numbers<[1], [0], [0], [1], [0, 0, 1, 1], [], []>} : vector<32x32xbf16>, vector<32x64xbf16>, vector<32x64xf32> -> vector<32x64xf32>
    %c8 = arith.constant 8 : index
    %c0_38 = arith.constant 0 : index
    %104 = vector.load %arg4[%c8, %c0_38] : memref<16x128xf32, #tpu.memory_space<vmem>>, vector<1x64xf32>
    %105 = vector.broadcast %104 : vector<1x64xf32> to vector<32x64xf32>
    %106 = arith.addf %103, %105 : vector<32x64xf32>
    %107 = vector.extract_strided_slice %106 {offsets = [0, 0], sizes = [32, 32], strides = [1, 1]} : vector<32x64xf32> to vector<32x32xf32>
    %108 = arith.truncf %107 : vector<32x32xf32> to vector<32x32xbf16>
    %109 = vector.extract_strided_slice %106 {offsets = [0, 32], sizes = [32, 32], strides = [1, 1]} : vector<32x64xf32> to vector<32x32xf32>
    %110 = arith.truncf %109 : vector<32x32xf32> to vector<32x32xbf16>
    %111 = tpu.concatenate %101, %101, %101, %101 in 0 : vector<16x32xf32>, vector<16x32xf32>, vector<16x32xf32>, vector<16x32xf32> -> vector<64x32xf32>
    %112 = arith.mulf %111, %2 : vector<64x32xf32>
    %113 = arith.truncf %112 : vector<64x32xf32> to vector<64x32xbf16>
    "tpu.trace_start"() <{level = 10 : i32, message = "nd,md->nm"}> : () -> ()
    %cst_39 = arith.constant dense<0.000000e+00> : vector<64x32xf32>
    %114 = tpu.matmul %113, %108, %cst_39 {dimension_numbers = #tpu.dot_dimension_numbers<[1], [1], [0], [0], [0, 0, 1, 0], [], []>} : vector<64x32xbf16>, vector<32x32xbf16>, vector<64x32xf32> -> vector<64x32xf32>
    "tpu.trace_stop"() : () -> ()
    %115 = arith.addf %114, %4 : vector<64x32xf32>
    %cst_40 = arith.constant dense<0xFF800000> : vector<64xf32>
    %116 = vector.multi_reduction <maximumf>, %115, %cst_40 [1] : vector<64x32xf32> to vector<64xf32>
    %117 = vector.shape_cast %116 : vector<64xf32> to vector<64x1xf32>
    %118 = vector.broadcast %117 : vector<64x1xf32> to vector<64x32xf32>
    %119 = arith.subf %115, %118 : vector<64x32xf32>
    %120 = math.exp %119 : vector<64x32xf32>
    %cst_41 = arith.constant dense<0.000000e+00> : vector<64xf32>
    %121 = vector.multi_reduction <add>, %120, %cst_41 [1] : vector<64x32xf32> to vector<64xf32>
    %122 = vector.shape_cast %121 : vector<64xf32> to vector<64x1xf32>
    %123 = tpu.reciprocal %122 {approx = true} : vector<64x1xf32> -> vector<64x1xf32>
    %124 = vector.broadcast %123 : vector<64x1xf32> to vector<64x32xf32>
    %125 = arith.mulf %120, %124 : vector<64x32xf32>
    %126 = arith.truncf %125 : vector<64x32xf32> to vector<64x32xbf16>
    %cst_42 = arith.constant dense<0.000000e+00> : vector<64x32xf32>
    %127 = tpu.matmul %126, %110, %cst_42 {dimension_numbers = #tpu.dot_dimension_numbers<[1], [0], [0], [1], [0, 0, 1, 1], [], []>} : vector<64x32xbf16>, vector<32x32xbf16>, vector<64x32xf32> -> vector<64x32xf32>
    %128 = arith.mulf %127, %2 : vector<64x32xf32>
    %129 = vector.extract_strided_slice %128 {offsets = [0, 0], sizes = [16, 32], strides = [1, 1]} : vector<64x32xf32> to vector<16x32xf32>
    %130 = vector.extract_strided_slice %128 {offsets = [16, 0], sizes = [16, 32], strides = [1, 1]} : vector<64x32xf32> to vector<16x32xf32>
    %131 = arith.addf %129, %130 : vector<16x32xf32>
    %132 = vector.extract_strided_slice %128 {offsets = [32, 0], sizes = [16, 32], strides = [1, 1]} : vector<64x32xf32> to vector<16x32xf32>
    %133 = arith.addf %131, %132 : vector<16x32xf32>
    %134 = vector.extract_strided_slice %128 {offsets = [48, 0], sizes = [16, 32], strides = [1, 1]} : vector<64x32xf32> to vector<16x32xf32>
    %135 = arith.addf %133, %134 : vector<16x32xf32>
    %c128 = arith.constant 128 : index
    %c0_43 = arith.constant 0 : index
    %136 = vector.load %arg3[%c128, %c0_43] : memref<256x128xbf16, #tpu.memory_space<vmem>>, vector<32x32xbf16>
    %137 = arith.truncf %135 : vector<16x32xf32> to vector<16x32xbf16>
    %cst_44 = arith.constant dense<0.000000e+00> : vector<16x32xf32>
    %138 = tpu.matmul %137, %136, %cst_44 {dimension_numbers = #tpu.dot_dimension_numbers<[1], [0], [0], [1], [0, 0, 1, 1], [], []>} : vector<16x32xbf16>, vector<32x32xbf16>, vector<16x32xf32> -> vector<16x32xf32>
    %139 = arith.addf %71, %138 : vector<16x32xf32>
    %c10 = arith.constant 10 : index
    %c0_45 = arith.constant 0 : index
    %140 = vector.load %arg4[%c10, %c0_45] : memref<16x128xf32, #tpu.memory_space<vmem>>, vector<1x32xf32>
    %141 = vector.broadcast %140 : vector<1x32xf32> to vector<16x32xf32>
    %142 = arith.addf %139, %141 : vector<16x32xf32>
    %cst_46 = arith.constant dense<0.000000e+00> : vector<16xf32>
    %143 = vector.multi_reduction <add>, %142, %cst_46 [1] : vector<16x32xf32> to vector<16xf32>
    %144 = vector.shape_cast %143 : vector<16xf32> to vector<16x1xf32>
    %cst_47 = arith.constant 3.200000e+01 : f32
    %145 = vector.broadcast %cst_47 : f32 to vector<16x1xf32>
    %146 = arith.divf %144, %145 : vector<16x1xf32>
    %147 = vector.broadcast %146 : vector<16x1xf32> to vector<16x32xf32>
    %148 = arith.subf %142, %147 : vector<16x32xf32>
    %149 = arith.mulf %148, %148 : vector<16x32xf32>
    %cst_48 = arith.constant dense<0.000000e+00> : vector<16xf32>
    %150 = vector.multi_reduction <add>, %149, %cst_48 [1] : vector<16x32xf32> to vector<16xf32>
    %151 = vector.shape_cast %150 : vector<16xf32> to vector<16x1xf32>
    %cst_49 = arith.constant 3.200000e+01 : f32
    %152 = vector.broadcast %cst_49 : f32 to vector<16x1xf32>
    %153 = arith.divf %151, %152 : vector<16x1xf32>
    %154 = vector.broadcast %146 : vector<16x1xf32> to vector<16x32xf32>
    %155 = arith.subf %142, %154 : vector<16x32xf32>
    %cst_50 = arith.constant 9.99999974E-6 : f32
    %156 = vector.broadcast %cst_50 : f32 to vector<16x1xf32>
    %157 = arith.addf %153, %156 : vector<16x1xf32>
    %158 = math.rsqrt %157 : vector<16x1xf32>
    %159 = vector.broadcast %158 : vector<16x1xf32> to vector<16x32xf32>
    %160 = arith.mulf %155, %159 : vector<16x32xf32>
    %c4 = arith.constant 4 : index
    %c0_51 = arith.constant 0 : index
    %161 = vector.load %arg4[%c4, %c0_51] : memref<16x128xf32, #tpu.memory_space<vmem>>, vector<1x32xf32>
    %162 = vector.broadcast %161 : vector<1x32xf32> to vector<16x32xf32>
    %163 = arith.mulf %160, %162 : vector<16x32xf32>
    %c5 = arith.constant 5 : index
    %c0_52 = arith.constant 0 : index
    %164 = vector.load %arg4[%c5, %c0_52] : memref<16x128xf32, #tpu.memory_space<vmem>>, vector<1x32xf32>
    %165 = vector.broadcast %164 : vector<1x32xf32> to vector<16x32xf32>
    %166 = arith.addf %163, %165 : vector<16x32xf32>
    %c160 = arith.constant 160 : index
    %c0_53 = arith.constant 0 : index
    %167 = vector.load %arg3[%c160, %c0_53] : memref<256x128xbf16, #tpu.memory_space<vmem>>, vector<32x64xbf16>
    %168 = arith.truncf %166 : vector<16x32xf32> to vector<16x32xbf16>
    %cst_54 = arith.constant dense<0.000000e+00> : vector<16x64xf32>
    %169 = tpu.matmul %168, %167, %cst_54 {dimension_numbers = #tpu.dot_dimension_numbers<[1], [0], [0], [1], [0, 0, 1, 1], [], []>} : vector<16x32xbf16>, vector<32x64xbf16>, vector<16x64xf32> -> vector<16x64xf32>
    %c11 = arith.constant 11 : index
    %c0_55 = arith.constant 0 : index
    %170 = vector.load %arg4[%c11, %c0_55] : memref<16x128xf32, #tpu.memory_space<vmem>>, vector<1x64xf32>
    %171 = vector.broadcast %170 : vector<1x64xf32> to vector<16x64xf32>
    %172 = arith.addf %169, %171 : vector<16x64xf32>
    %cst_56 = arith.constant 0.000000e+00 : f32
    %173 = vector.broadcast %cst_56 : f32 to vector<16x64xf32>
    %174 = arith.maximumf %172, %173 : vector<16x64xf32>
    %c192 = arith.constant 192 : index
    %c0_57 = arith.constant 0 : index
    %175 = vector.load %arg3[%c192, %c0_57] : memref<256x128xbf16, #tpu.memory_space<vmem>>, vector<64x32xbf16>
    %176 = arith.truncf %174 : vector<16x64xf32> to vector<16x64xbf16>
    %cst_58 = arith.constant dense<0.000000e+00> : vector<16x32xf32>
    %177 = tpu.matmul %176, %175, %cst_58 {dimension_numbers = #tpu.dot_dimension_numbers<[1], [0], [0], [1], [0, 0, 1, 1], [], []>} : vector<16x64xbf16>, vector<64x32xbf16>, vector<16x32xf32> -> vector<16x32xf32>
    %178 = arith.addf %142, %177 : vector<16x32xf32>
    %c12 = arith.constant 12 : index
    %c0_59 = arith.constant 0 : index
    %179 = vector.load %arg4[%c12, %c0_59] : memref<16x128xf32, #tpu.memory_space<vmem>>, vector<1x32xf32>
    %180 = vector.broadcast %179 : vector<1x32xf32> to vector<16x32xf32>
    %181 = arith.addf %178, %180 : vector<16x32xf32>
    %c0_60 = arith.constant 0 : index
    %c0_61 = arith.constant 0 : index
    %182 = vector.load %arg5[%c0_60, %c0_61] : memref<16x32xf32, #tpu.memory_space<vmem>>, vector<16x32xf32>
    tpu.vector_store %arg5[%c0_60, %c0_61], %181 {strides = array<i32>} : memref<16x32xf32, #tpu.memory_space<vmem>>, vector<16x32xf32>,
    return
  }
}

</mosaic_0001>

<llo_original>
// kernel: decoder_block_forward.1
$region0: #{decoder_block_forward.1}
  #allocation0 [shape = 'u32[]', space=smem, size = 0x4, offset = 0x4, fixed_abs, tag = 'smem constant byte address 0x4 - core index']
  #allocation1 [shape = 'u32[144,128]{1,0:T(1,128)}', space=vmem, size = 0x12000, scoped, tag = 'internal scratch']
  %s0 = inlined_call_operand.vmem [shape: f32[16,32], index: 0, kind: input, shape index: {}]
  %s1 = inlined_call_operand.vmem [shape: bf16[32,32], index: 1, kind: input, shape index: {}]
  %s2 = inlined_call_operand.hbm [shape: f32[64,128], index: 2, kind: input, shape index: {}]
  %s3 = inlined_call_operand.hbm [shape: bf16[256,128], index: 3, kind: input, shape index: {}]
  %s4 = inlined_call_operand.vmem [shape: f32[16,128], index: 4, kind: input, shape index: {}]
  %s5 = inlined_call_operand.hbm [shape: f32[16,32], index: 5, kind: output, shape index: {}]
  %s6 = sld [smem:[#allocation0]]
  $region38: #{decoder_block_forward.1} parent=0
    _
  %s8 = ssub.s32 1, %s6
  %s9 = scalar_select 0, %s8, %s6
  $region1: #{decoder_block_forward.1} parent=0
    #allocation2 [shape = 'u8[32768]{0}', space=vmem, size = 0x8000, scoped, tag = 'input window, operand 2, single buffered']
    #allocation3 [shape = 's32[1]{0}', space=sflag, size = 0x4, scoped, tag = 'scoped memory for decoder_block_forward.1']
    #allocation4 [shape = 's32[1]{0}', space=sflag, size = 0x4, scoped, tag = 'scoped memory for decoder_block_forward.1']
    #allocation5 [shape = 'u8[65536]{0}', space=vmem, size = 0x10000, scoped, tag = 'input window, operand 3, single buffered']
    #allocation6 [shape = 's32[1]{0}', space=sflag, size = 0x4, scoped, tag = 'scoped memory for decoder_block_forward.1']
    #allocation7 [shape = 'u8[8192]{0}', space=vmem, size = 0x2000, scoped, tag = 'output window, operand 0, single buffered']
    %10 = vsyncpa [#allocation3], 0
    %11 = vsyncpa [#allocation6], 0
    %12 = vsyncpa [#allocation4], 0
    // Predicated region
    $region2: #{decoder_block_forward.1} parent=1 // pred_check
      _
    $region3: #{decoder_block_forward.1} parent=1 // pred_check_branch
      %14 = sbr.rel (0) target = $region5
    $region4: #{decoder_block_forward.1} parent=1 // pred_region
      _
    $region5: #{decoder_block_forward.1} parent=1 // pred_fallthru
      _
    // Predicated region
    $region6: #{decoder_block_forward.1} parent=1 // pred_check
      _
    $region7: #{decoder_block_forward.1} parent=1 // pred_check_branch
      %16 = sbr.rel (0) target = $region9
    $region8: #{decoder_block_forward.1} parent=1 // pred_region
      _
    $region9: #{decoder_block_forward.1} parent=1 // pred_fallthru
      _
    // Predicated region
    $region10: #{decoder_block_forward.1} parent=1 // pred_check
      _
    $region11: #{decoder_block_forward.1} parent=1 // pred_check_branch
      %18 = sbr.rel (0) target = $region13
    $region12: #{decoder_block_forward.1} parent=1 // pred_region
      %s20 = ssub.s32 1024, 1024
      %21 = vsyncadd [#allocation3], %s20
      %s22 = sshll.u32 [#allocation2], 4
      %s23 = int_to_ptr.vmem [resolvable:$true] %s22
      %28 = dma.hbm_to_vmem [thread:$0]  %s2, 1024, %s23, [#allocation3], 128, 128, 8
    $region13: #{decoder_block_forward.1} parent=1 // pred_fallthru
      _
    // Predicated region
    $region14: #{decoder_block_forward.1} parent=1 // pred_check
      _
    $region15: #{decoder_block_forward.1} parent=1 // pred_check_branch
      %30 = sbr.rel (0) target = $region17
    $region16: #{decoder_block_forward.1} parent=1 // pred_region
      %s32 = ssub.s32 2048, 2048
      %33 = vsyncadd [#allocation6], %s32
      %s34 = sshll.u32 [#allocation5], 4
      %s35 = int_to_ptr.vmem [resolvable:$true] %s34
      %40 = dma.hbm_to_vmem [thread:$0]  %s3, 2048, %s35, [#allocation6], 64, 64, 4
    $region17: #{decoder_block_forward.1} parent=1 // pred_fallthru
      _
    // Predicated region
    $region18: #{decoder_block_forward.1} parent=1 // pred_check
      _
    $region19: #{decoder_block_forward.1} parent=1 // pred_check_branch
      %42 = sbr.rel (0) target = $region21
    $region20: #{decoder_block_forward.1} parent=1 // pred_region
      _
    $region21: #{decoder_block_forward.1} parent=1 // pred_fallthru
      _
    // Predicated region
    $region22: #{decoder_block_forward.1} parent=1 // pred_check
      _
    $region23: #{decoder_block_forward.1} parent=1 // pred_check_branch
      %44 = sbr.rel (0) target = $region25
    $region24: #{decoder_block_forward.1} parent=1 // pred_region
      %45 = dma.done [#allocation3], 1024
    $region25: #{decoder_block_forward.1} parent=1 // pred_fallthru
      _
    // Predicated region
    $region26: #{decoder_block_forward.1} parent=1 // pred_check
      _
    $region27: #{decoder_block_forward.1} parent=1 // pred_check_branch
      %47 = sbr.rel (0) target = $region29
    $region28: #{decoder_block_forward.1} parent=1 // pred_region
      %48 = dma.done [#allocation6], 2048
    $region29: #{decoder_block_forward.1} parent=1 // pred_fallthru
      _
    %v50 = vld [vmem:[%s0] sm:$0xff]
    %v51 = vld [vmem:[%s0 + $0x8] sm:$0xff]
    %v52 = vld [vmem:[%s1] sm:$0xf]
    %v53 = vld [vmem:[%s1 + $0x4] sm:$0xf]
    %v54 = vld [vmem:[%s1 + $0x8] sm:$0xf]
    %v55 = vld [vmem:[%s1 + $0xc] sm:$0xf]
    %v56 = vld [vmem:[#allocation2] sm:$0xff]
    %v57 = vld [vmem:[#allocation2 + $0x8] sm:$0xff]
    %v58 = vld [vmem:[#allocation2 + $0x10] sm:$0xff]
    %v59 = vld [vmem:[#allocation2 + $0x18] sm:$0xff]
    %v60 = vld [vmem:[#allocation2 + $0x20] sm:$0xff]
    %v61 = vld [vmem:[#allocation2 + $0x28] sm:$0xff]
    %v62 = vld [vmem:[#allocation2 + $0x30] sm:$0xff]
    %v63 = vld [vmem:[#allocation2 + $0x38] sm:$0xff]
    %vm64 = vcmask 261120
    %v65 = vsel %vm64, %v50, 0.0
    %66 = vadd.xlane.f32.xlu0 %v65
    %v67 = vpop.xlane.xlu0 %66
    %v68 = vsel %vm64, %v51, 0.0
    %69 = vadd.xlane.f32.xlu0 %v68
    %v70 = vpop.xlane.xlu0 %69
    %v71 = vrcp.pop 32.0
    %v72 = vmul.f32 %v67, %v71
    %v73 = vmul.f32 %v70, %v71
    %v74 = vsub.f32 %v50, %v72
    %v75 = vsub.f32 %v51, %v73
    %v76 = vmul.f32 %v74, %v74
    %v77 = vmul.f32 %v75, %v75
    %v78 = vsel %vm64, %v76, 0.0
    %79 = vadd.xlane.f32.xlu0 %v78
    %v80 = vpop.xlane.xlu0 %79
    %v81 = vsel %vm64, %v77, 0.0
    %82 = vadd.xlane.f32.xlu0 %v81
    %v83 = vpop.xlane.xlu0 %82
    %v84 = vmul.f32 %v80, %v71
    %v85 = vmul.f32 %v83, %v71
    %v86 = vadd.f32 %v84, 1e-05
    %v87 = vadd.f32 %v85, 1e-05
    %v88 = vrsqrt.pop %v86
    %v89 = vrsqrt.pop %v87
    %v90 = vmul.f32 %v74, %v88
    %v91 = vmul.f32 %v75, %v89
    %v92 = vld [vmem:[%s4] sm:$0x1]
    %v93 = vlaneseq
    %v94 = vshrl.u32 %v93, 7
    %v95 = vsub.s32 0, %v94
    %v96 = vrot.slane %v92, %v95
    %v97 = vmul.f32 %v90, %v96
    %v98 = vmul.f32 %v91, %v96
    %v99 = vld [vmem:[%s4 + $0x1] sm:$0x1]
    %v100 = vlaneseq
    %v101 = vshrl.u32 %v100, 7
    %v102 = vsub.s32 0, %v101
    %v103 = vrot.slane %v99, %v102
    %v104 = vadd.f32 %v97, %v103
    %v105 = vadd.f32 %v98, %v103
    %v106 = vld [vmem:[#allocation5] sm:$0xf]
    %v107 = vld [vmem:[#allocation5 + $0x4] sm:$0xf]
    %v108 = vld [vmem:[#allocation5 + $0x8] sm:$0xf]
    %v109 = vld [vmem:[#allocation5 + $0xc] sm:$0xf]
    %v110 = vpack.c.bf16 %v105, %v104
    %v111 = vld [vmem:[%s4 + $0x6] sm:$0x1]
    %v112 = vlaneseq
    %v113 = vshrl.u32 %v112, 7
    %v114 = vsub.s32 0, %v113
    %v115 = vrot.slane %v111, %v114
    %v120 = vunpack.c.l.b16 %v106
    %v121 = vunpack.c.l.b16 %v107
    %v122 = vunpack.c.l.b16 %v108
    %v123 = vunpack.c.l.b16 %v109
    %v124 = vpack.c.b16 %v121, %v120
    %v125 = vpack.c.b16 %v123, %v122
    %v129 = vsel %vm64, %v110, 0
    %131 = vmatprep.subr.bf16.mxu0 0
    %132 = vmatpush1.bf16.msra.mxu0 0
    %133 = vmatprep.subr.bf16.mxu0 0
    %134 = vmatpush1.bf16.msra.mxu0 0
    %135 = vmatprep.subr.bf16.mxu0 0
    %136 = vmatpush1.bf16.msra.mxu0 0
    %137 = vmatprep.subr.bf16.mxu0 0
    %138 = vmatpush1.bf16.msra.mxu0 0
    %139 = vmatprep.subr.bf16.mxu0 0
    %140 = vmatpush1.bf16.msra.mxu0 0
    %141 = vmatprep.subr.bf16.mxu0 0
    %142 = vmatpush1.bf16.msra.mxu0 0
    %143 = vmatprep.subr.bf16.mxu0 0
    %144 = vmatpush1.bf16.msra.mxu0 %v125
    %145 = vmatprep.subr.bf16.mxu0 0
    %146 = vmatpush1.bf16.msra.mxu0 %v124
    %147 = vmatprep.subr.bf16.mxu0 0
    %148 = vmatpush2.bf16.msra.mxu0 0
    %149 = vmatprep.subr.bf16.mxu0 0
    %150 = vmatpush2.bf16.msra.mxu0 0
    %151 = vmatprep.subr.bf16.mxu0 0
    %152 = vmatpush2.bf16.msra.mxu0 0
    %153 = vmatprep.subr.bf16.mxu0 0
    %154 = vmatpush2.bf16.msra.mxu0 0
    %155 = vmatprep.subr.bf16.mxu0 0
    %156 = vmatpush2.bf16.msra.mxu0 0
    %157 = vmatprep.subr.bf16.mxu0 0
    %158 = vmatpush2.bf16.msra.mxu0 0
    %159 = vmatprep.subr.bf16.mxu0 0
    %160 = vmatpush2.bf16.msra.mxu0 0
    %161 = vmatprep.subr.bf16.mxu0 0
    %162 = vmatpush2.bf16.msra.mxu0 0
    %163 = vmatprep.mubr.bf16.mxu0 0
    %164 = vmatmul.mubr.bf16.gmra.mxu0 %v129
    %v165 = vpop.f32.mrf.mxu0
    %v166 = vadd.f32 %v115, %v165
    %v167 = vpop.f32.mrf.mxu0
    %v168 = vpop.f32.mrf.mxu0
    %v169 = vadd.f32 %v115, %v168
    %v170 = vpop.f32.mrf.mxu0
    %171 = vdwg.mxu0
    %v172 = vpack.c.bf16 %v169, %v166
    %v173 = vmul.f32 %v166, %v56
    %v174 = vmul.f32 %v169, %v57
    %v175 = vmul.f32 %v166, %v58
    %v176 = vmul.f32 %v169, %v59
    %v177 = vmul.f32 %v166, %v60
    %v178 = vmul.f32 %v169, %v61
    %v179 = vmul.f32 %v166, %v62
    %v180 = vmul.f32 %v169, %v63
    %v181 = vpack.c.bf16 %v174, %v173
    %v182 = vpack.c.bf16 %v176, %v175
    %v183 = vpack.c.bf16 %v178, %v177
    %v184 = vpack.c.bf16 %v180, %v179
    %186 = vrot.lane.b32.xlu0 %v172, 96
    %v187 = vpop.permute.xlu0 %186
    %196 = vrot.lane.b32.xlu0 %v56, 96
    %v197 = vpop.permute.xlu0 %196
    %198 = vrot.lane.b32.xlu0 %v57, 96
    %v199 = vpop.permute.xlu0 %198
    %200 = vrot.lane.b32.xlu0 %v58, 96
    %v201 = vpop.permute.xlu0 %200
    %202 = vrot.lane.b32.xlu0 %v59, 96
    %v203 = vpop.permute.xlu0 %202
    %204 = vrot.lane.b32.xlu0 %v60, 96
    %v205 = vpop.permute.xlu0 %204
    %206 = vrot.lane.b32.xlu0 %v61, 96
    %v207 = vpop.permute.xlu0 %206
    %208 = vrot.lane.b32.xlu0 %v62, 96
    %v209 = vpop.permute.xlu0 %208
    %210 = vrot.lane.b32.xlu0 %v63, 96
    %v211 = vpop.permute.xlu0 %210
    %v221 = vsel %vm64, %v181, 0
    %v224 = vsel %vm64, %v182, 0
    %v227 = vsel %vm64, %v183, 0
    %v230 = vsel %vm64, %v184, 0
    %v233 = vsel %vm64, %v187, 0
    %235 = vmatprep.subr.bf16.mxu0 0
    %236 = vmatpush1.bf16.xpose.msra.mxu0 0
    %237 = vmatprep.subr.bf16.mxu0 0
    %238 = vmatpush1.bf16.xpose.msra.mxu0 0
    %239 = vmatprep.subr.bf16.mxu0 0
    %240 = vmatpush1.bf16.xpose.msra.mxu0 0
    %241 = vmatprep.subr.bf16.mxu0 0
    %242 = vmatpush1.bf16.xpose.msra.mxu0 0
    %243 = vmatprep.subr.bf16.mxu0 0
    %244 = vmatpush1.bf16.xpose.msra.mxu0 0
    %245 = vmatprep.subr.bf16.mxu0 0
    %246 = vmatpush1.bf16.xpose.msra.mxu0 0
    %247 = vmatprep.subr.bf16.mxu0 0
    %248 = vmatpush1.bf16.xpose.msra.mxu0 0
    %249 = vmatprep.subr.bf16.mxu0 0
    %250 = vmatpush1.bf16.xpose.msra.mxu0 %v233
    %251 = vmatprep.subr.bf16.mxu0 0
    %252 = vmatpush2.bf16.xpose.msra.mxu0 0
    %253 = vmatprep.subr.bf16.mxu0 0
    %254 = vmatpush2.bf16.xpose.msra.mxu0 0
    %255 = vmatprep.subr.bf16.mxu0 0
    %256 = vmatpush2.bf16.xpose.msra.mxu0 0
    %257 = vmatprep.subr.bf16.mxu0 0
    %258 = vmatpush2.bf16.xpose.msra.mxu0 0
    %259 = vmatprep.subr.bf16.mxu0 0
    %260 = vmatpush2.bf16.xpose.msra.mxu0 0
    %261 = vmatprep.subr.bf16.mxu0 0
    %262 = vmatpush2.bf16.xpose.msra.mxu0 0
    %263 = vmatprep.subr.bf16.mxu0 0
    %264 = vmatpush2.bf16.xpose.msra.mxu0 0
    %265 = vmatprep.subr.bf16.mxu0 0
    %266 = vmatpush2.bf16.xpose.msra.mxu0 0
    %267 = vmatprep.mubr.bf16.mxu0 0
    %268 = vmatmul.mubr.bf16.gmra.mxu0 %v221
    %v269 = vpop.f32.mrf.mxu0
    %v270 = vadd.f32 %v197, %v269
    %v271 = vpop.f32.mrf.mxu0
    %v272 = vpop.f32.mrf.mxu0
    %v273 = vadd.f32 %v199, %v272
    %v274 = vpop.f32.mrf.mxu0
    %275 = vmatprep.mubr.bf16.mxu0 0
    %276 = vmatmul.mubr.bf16.gmra.mxu0 %v224
    %v277 = vpop.f32.mrf.mxu0
    %v278 = vadd.f32 %v201, %v277
    %v279 = vpop.f32.mrf.mxu0
    %v280 = vpop.f32.mrf.mxu0
    %v281 = vadd.f32 %v203, %v280
    %v282 = vpop.f32.mrf.mxu0
    %283 = vmatprep.mubr.bf16.mxu0 0
    %284 = vmatmul.mubr.bf16.gmra.mxu0 %v227
    %v285 = vpop.f32.mrf.mxu0
    %v286 = vadd.f32 %v205, %v285
    %v287 = vpop.f32.mrf.mxu0
    %v288 = vpop.f32.mrf.mxu0
    %v289 = vadd.f32 %v207, %v288
    %v290 = vpop.f32.mrf.mxu0
    %291 = vmatprep.mubr.bf16.mxu0 0
    %292 = vmatmul.mubr.bf16.gmra.mxu0 %v230
    %v293 = vpop.f32.mrf.mxu0
    %v294 = vadd.f32 %v209, %v293
    %v295 = vpop.f32.mrf.mxu0
    %v296 = vpop.f32.mrf.mxu0
    %v297 = vadd.f32 %v211, %v296
    %v298 = vpop.f32.mrf.mxu0
    %299 = vdwg.mxu0
    %vm300 = vcmask 130048
    %v301 = vsel %vm300, %v270, -inf
    %302 = vmax.xlane.f32.xlu0 %v301
    %v303 = vpop.xlane.xlu0 %302
    %v304 = vsel %vm300, %v273, -inf
    %305 = vmax.xlane.f32.xlu0 %v304
    %v306 = vpop.xlane.xlu0 %305
    %v307 = vsel %vm300, %v278, -inf
    %308 = vmax.xlane.f32.xlu0 %v307
    %v309 = vpop.xlane.xlu0 %308
    %v310 = vsel %vm300, %v281, -inf
    %311 = vmax.xlane.f32.xlu0 %v310
    %v312 = vpop.xlane.xlu0 %311
    %v313 = vsel %vm300, %v286, -inf
    %314 = vmax.xlane.f32.xlu0 %v313
    %v315 = vpop.xlane.xlu0 %314
    %v316 = vsel %vm300, %v289, -inf
    %317 = vmax.xlane.f32.xlu0 %v316
    %v318 = vpop.xlane.xlu0 %317
    %v319 = vsel %vm300, %v294, -inf
    %320 = vmax.xlane.f32.xlu0 %v319
    %v321 = vpop.xlane.xlu0 %320
    %v322 = vsel %vm300, %v297, -inf
    %323 = vmax.xlane.f32.xlu0 %v322
    %v324 = vpop.xlane.xlu0 %323
    %v325 = vsub.f32 %v270, %v303
    %v326 = vsub.f32 %v273, %v306
    %v327 = vsub.f32 %v278, %v309
    %v328 = vsub.f32 %v281, %v312
    %v329 = vsub.f32 %v286, %v315
    %v330 = vsub.f32 %v289, %v318
    %v331 = vsub.f32 %v294, %v321
    %v332 = vsub.f32 %v297, %v324
    %v333 = vmul.f32 %v325, 1.442695
    %v334 = vpow.pop %v333
    %v335 = vmul.f32 %v326, 1.442695
    %v336 = vpow.pop %v335
    %v337 = vmul.f32 %v327, 1.442695
    %v338 = vpow.pop %v337
    %v339 = vmul.f32 %v328, 1.442695
    %v340 = vpow.pop %v339
    %v341 = vmul.f32 %v329, 1.442695
    %v342 = vpow.pop %v341
    %v343 = vmul.f32 %v330, 1.442695
    %v344 = vpow.pop %v343
    %v345 = vmul.f32 %v331, 1.442695
    %v346 = vpow.pop %v345
    %v347 = vmul.f32 %v332, 1.442695
    %v348 = vpow.pop %v347
    %v349 = vsel %vm300, %v334, 0.0
    %350 = vadd.xlane.f32.xlu0 %v349
    %v351 = vpop.xlane.xlu0 %350
    %v352 = vsel %vm300, %v336, 0.0
    %353 = vadd.xlane.f32.xlu0 %v352
    %v354 = vpop.xlane.xlu0 %353
    %v355 = vsel %vm300, %v338, 0.0
    %356 = vadd.xlane.f32.xlu0 %v355
    %v357 = vpop.xlane.xlu0 %356
    %v358 = vsel %vm300, %v340, 0.0
    %359 = vadd.xlane.f32.xlu0 %v358
    %v360 = vpop.xlane.xlu0 %359
    %v361 = vsel %vm300, %v342, 0.0
    %362 = vadd.xlane.f32.xlu0 %v361
    %v363 = vpop.xlane.xlu0 %362
    %v364 = vsel %vm300, %v344, 0.0
    %365 = vadd.xlane.f32.xlu0 %v364
    %v366 = vpop.xlane.xlu0 %365
    %v367 = vsel %vm300, %v346, 0.0
    %368 = vadd.xlane.f32.xlu0 %v367
    %v369 = vpop.xlane.xlu0 %368
    %v370 = vsel %vm300, %v348, 0.0
    %371 = vadd.xlane.f32.xlu0 %v370
    %v372 = vpop.xlane.xlu0 %371
    %v373 = vrcp.pop %v351
    %v374 = vrcp.pop %v354
    %v375 = vrcp.pop %v357
    %v376 = vrcp.pop %v360
    %v377 = vrcp.pop %v363
    %v378 = vrcp.pop %v366
    %v379 = vrcp.pop %v369
    %v380 = vrcp.pop %v372
    %v381 = vmul.f32 %v334, %v373
    %v382 = vmul.f32 %v336, %v374
    %v383 = vmul.f32 %v338, %v375
    %v384 = vmul.f32 %v340, %v376
    %v385 = vmul.f32 %v342, %v377
    %v386 = vmul.f32 %v344, %v378
    %v387 = vmul.f32 %v346, %v379
    %v388 = vmul.f32 %v348, %v380
    %v389 = vpack.c.bf16 %v382, %v381
    %v390 = vpack.c.bf16 %v384, %v383
    %v391 = vpack.c.bf16 %v386, %v385
    %v392 = vpack.c.bf16 %v388, %v387
    %393 = vrot.lane.b32.xlu0 %v172, 64
    %v394 = vpop.permute.xlu0 %393
    %v397 = vsel %vm300, %v389, 0
    %v400 = vsel %vm300, %v390, 0
    %v403 = vsel %vm300, %v391, 0
    %v406 = vsel %vm300, %v392, 0
    %408 = vmatprep.subr.bf16.mxu0 0
    %409 = vmatpush1.bf16.msra.mxu0 0
    %410 = vmatprep.subr.bf16.mxu0 0
    %411 = vmatpush1.bf16.msra.mxu0 0
    %412 = vmatprep.subr.bf16.mxu0 0
    %413 = vmatpush1.bf16.msra.mxu0 0
    %414 = vmatprep.subr.bf16.mxu0 0
    %415 = vmatpush1.bf16.msra.mxu0 0
    %416 = vmatprep.subr.bf16.mxu0 0
    %417 = vmatpush1.bf16.msra.mxu0 0
    %418 = vmatprep.subr.bf16.mxu0 0
    %419 = vmatpush1.bf16.msra.mxu0 0
    %420 = vmatprep.subr.bf16.mxu0 0
    %421 = vmatpush1.bf16.msra.mxu0 0
    %422 = vmatprep.subr.bf16.mxu0 0
    %423 = vmatpush1.bf16.msra.mxu0 %v394
    %424 = vmatprep.subr.bf16.mxu0 0
    %425 = vmatpush2.bf16.msra.mxu0 0
    %426 = vmatprep.subr.bf16.mxu0 0
    %427 = vmatpush2.bf16.msra.mxu0 0
    %428 = vmatprep.subr.bf16.mxu0 0
    %429 = vmatpush2.bf16.msra.mxu0 0
    %430 = vmatprep.subr.bf16.mxu0 0
    %431 = vmatpush2.bf16.msra.mxu0 0
    %432 = vmatprep.subr.bf16.mxu0 0
    %433 = vmatpush2.bf16.msra.mxu0 0
    %434 = vmatprep.subr.bf16.mxu0 0
    %435 = vmatpush2.bf16.msra.mxu0 0
    %436 = vmatprep.subr.bf16.mxu0 0
    %437 = vmatpush2.bf16.msra.mxu0 0
    %438 = vmatprep.subr.bf16.mxu0 0
    %439 = vmatpush2.bf16.msra.mxu0 0
    %440 = vmatprep.mubr.bf16.mxu0 0
    %441 = vmatmul.mubr.bf16.gmra.mxu0 %v397
    %v442 = vpop.f32.mrf.mxu0
    %v443 = vadd.f32 0.0, %v442
    %v444 = vpop.f32.mrf.mxu0
    %v445 = vpop.f32.mrf.mxu0
    %v446 = vadd.f32 0.0, %v445
    %v447 = vpop.f32.mrf.mxu0
    %448 = vmatprep.mubr.bf16.mxu0 0
    %449 = vmatmul.mubr.bf16.gmra.mxu0 %v400
    %v450 = vpop.f32.mrf.mxu0
    %v451 = vadd.f32 0.0, %v450
    %v452 = vpop.f32.mrf.mxu0
    %v453 = vpop.f32.mrf.mxu0
    %v454 = vadd.f32 0.0, %v453
    %v455 = vpop.f32.mrf.mxu0
    %456 = vmatprep.mubr.bf16.mxu0 0
    %457 = vmatmul.mubr.bf16.gmra.mxu0 %v403
    %v458 = vpop.f32.mrf.mxu0
    %v459 = vadd.f32 0.0, %v458
    %v460 = vpop.f32.mrf.mxu0
    %v461 = vpop.f32.mrf.mxu0
    %v462 = vadd.f32 0.0, %v461
    %v463 = vpop.f32.mrf.mxu0
    %464 = vmatprep.mubr.bf16.mxu0 0
    %465 = vmatmul.mubr.bf16.gmra.mxu0 %v406
    %v466 = vpop.f32.mrf.mxu0
    %v467 = vadd.f32 0.0, %v466
    %v468 = vpop.f32.mrf.mxu0
    %v469 = vpop.f32.mrf.mxu0
    %v470 = vadd.f32 0.0, %v469
    %v471 = vpop.f32.mrf.mxu0
    %472 = vdwg.mxu0
    %v473 = vmul.f32 %v443, %v56
    %v474 = vmul.f32 %v446, %v57
    %v475 = vmul.f32 %v451, %v58
    %v476 = vmul.f32 %v454, %v59
    %v477 = vmul.f32 %v459, %v60
    %v478 = vmul.f32 %v462, %v61
    %v479 = vmul.f32 %v467, %v62
    %v480 = vmul.f32 %v470, %v63
    %v481 = vadd.f32 %v473, %v475
    %v482 = vadd.f32 %v474, %v476
    %v483 = vadd.f32 %v481, %v477
    %v484 = vadd.f32 %v482, %v478
    %v485 = vadd.f32 %v483, %v479
    %v486 = vadd.f32 %v484, %v480
    %v487 = vld [vmem:[#allocation5 + $0x30] sm:$0xf]
    %v488 = vld [vmem:[#allocation5 + $0x34] sm:$0xf]
    %v489 = vld [vmem:[#allocation5 + $0x38] sm:$0xf]
    %v490 = vld [vmem:[#allocation5 + $0x3c] sm:$0xf]
    %v491 = vpack.c.bf16 %v486, %v485
    %v496 = vunpack.c.l.b16 %v487
    %v497 = vunpack.c.l.b16 %v488
    %v498 = vunpack.c.l.b16 %v489
    %v499 = vunpack.c.l.b16 %v490
    %v500 = vpack.c.b16 %v497, %v496
    %v501 = vpack.c.b16 %v499, %v498
    %v505 = vsel %vm64, %v491, 0
    %507 = vmatprep.subr.bf16.mxu0 0
    %508 = vmatpush1.bf16.msra.mxu0 0
    %509 = vmatprep.subr.bf16.mxu0 0
    %510 = vmatpush1.bf16.msra.mxu0 0
    %511 = vmatprep.subr.bf16.mxu0 0
    %512 = vmatpush1.bf16.msra.mxu0 0
    %513 = vmatprep.subr.bf16.mxu0 0
    %514 = vmatpush1.bf16.msra.mxu0 0
    %515 = vmatprep.subr.bf16.mxu0 0
    %516 = vmatpush1.bf16.msra.mxu0 0
    %517 = vmatprep.subr.bf16.mxu0 0
    %518 = vmatpush1.bf16.msra.mxu0 0
    %519 = vmatprep.subr.bf16.mxu0 0
    %520 = vmatpush1.bf16.msra.mxu0 %v501
    %521 = vmatprep.subr.bf16.mxu0 0
    %522 = vmatpush1.bf16.msra.mxu0 %v500
    %523 = vmatprep.subr.bf16.mxu0 0
    %524 = vmatpush2.bf16.msra.mxu0 0
    %525 = vmatprep.subr.bf16.mxu0 0
    %526 = vmatpush2.bf16.msra.mxu0 0
    %527 = vmatprep.subr.bf16.mxu0 0
    %528 = vmatpush2.bf16.msra.mxu0 0
    %529 = vmatprep.subr.bf16.mxu0 0
    %530 = vmatpush2.bf16.msra.mxu0 0
    %531 = vmatprep.subr.bf16.mxu0 0
    %532 = vmatpush2.bf16.msra.mxu0 0
    %533 = vmatprep.subr.bf16.mxu0 0
    %534 = vmatpush2.bf16.msra.mxu0 0
    %535 = vmatprep.subr.bf16.mxu0 0
    %536 = vmatpush2.bf16.msra.mxu0 0
    %537 = vmatprep.subr.bf16.mxu0 0
    %538 = vmatpush2.bf16.msra.mxu0 0
    %539 = vmatprep.mubr.bf16.mxu0 0
    %540 = vmatmul.mubr.bf16.gmra.mxu0 %v505
    %v541 = vpop.f32.mrf.mxu0
    %v542 = vadd.f32 0.0, %v541
    %v543 = vpop.f32.mrf.mxu0
    %v544 = vpop.f32.mrf.mxu0
    %v545 = vadd.f32 0.0, %v544
    %v546 = vpop.f32.mrf.mxu0
    %547 = vdwg.mxu0
    %v548 = vadd.f32 %v50, %v542
    %v549 = vadd.f32 %v51, %v545
    %v550 = vld [vmem:[%s4 + $0x9] sm:$0x1]
    %v551 = vlaneseq
    %v552 = vshrl.u32 %v551, 7
    %v553 = vsub.s32 0, %v552
    %v554 = vrot.slane %v550, %v553
    %v555 = vadd.f32 %v548, %v554
    %v556 = vadd.f32 %v549, %v554
    %v557 = vsel %vm64, %v555, 0.0
    %558 = vadd.xlane.f32.xlu0 %v557
    %v559 = vpop.xlane.xlu0 %558
    %v560 = vsel %vm64, %v556, 0.0
    %561 = vadd.xlane.f32.xlu0 %v560
    %v562 = vpop.xlane.xlu0 %561
    %v563 = vmul.f32 %v559, %v71
    %v564 = vmul.f32 %v562, %v71
    %v565 = vsub.f32 %v555, %v563
    %v566 = vsub.f32 %v556, %v564
    %v567 = vmul.f32 %v565, %v565
    %v568 = vmul.f32 %v566, %v566
    %v569 = vsel %vm64, %v567, 0.0
    %570 = vadd.xlane.f32.xlu0 %v569
    %v571 = vpop.xlane.xlu0 %570
    %v572 = vsel %vm64, %v568, 0.0
    %573 = vadd.xlane.f32.xlu0 %v572
    %v574 = vpop.xlane.xlu0 %573
    %v575 = vmul.f32 %v571, %v71
    %v576 = vmul.f32 %v574, %v71
    %v577 = vadd.f32 %v575, 1e-05
    %v578 = vadd.f32 %v576, 1e-05
    %v579 = vrsqrt.pop %v577
    %v580 = vrsqrt.pop %v578
    %v581 = vmul.f32 %v565, %v579
    %v582 = vmul.f32 %v566, %v580
    %v583 = vld [vmem:[%s4 + $0x2] sm:$0x1]
    %v584 = vlaneseq
    %v585 = vshrl.u32 %v584, 7
    %v586 = vsub.s32 0, %v585
    %v587 = vrot.slane %v583, %v586
    %v588 = vmul.f32 %v581, %v587
    %v589 = vmul.f32 %v582, %v587
    %v590 = vld [vmem:[%s4 + $0x3] sm:$0x1]
    %v591 = vlaneseq
    %v592 = vshrl.u32 %v591, 7
    %v593 = vsub.s32 0, %v592
    %v594 = vrot.slane %v590, %v593
    %v595 = vadd.f32 %v588, %v594
    %v596 = vadd.f32 %v589, %v594
    %v597 = vld [vmem:[#allocation5 + $0x10] sm:$0xf]
    %v598 = vld [vmem:[#allocation5 + $0x14] sm:$0xf]
    %v599 = vld [vmem:[#allocation5 + $0x18] sm:$0xf]
    %v600 = vld [vmem:[#allocation5 + $0x1c] sm:$0xf]
    %v601 = vpack.c.bf16 %v596, %v595
    %v602 = vld [vmem:[%s4 + $0x7] sm:$0x1]
    %v603 = vlaneseq
    %v604 = vshrl.u32 %v603, 7
    %v605 = vsub.s32 0, %v604
    %v606 = vrot.slane %v602, %v605
    %v611 = vunpack.c.l.b16 %v597
    %v612 = vunpack.c.l.b16 %v598
    %v613 = vunpack.c.l.b16 %v599
    %v614 = vunpack.c.l.b16 %v600
    %v615 = vpack.c.b16 %v612, %v611
    %v616 = vpack.c.b16 %v614, %v613
    %v620 = vsel %vm64, %v601, 0
    %622 = vmatprep.subr.bf16.mxu0 0
    %623 = vmatpush1.bf16.msra.mxu0 0
    %624 = vmatprep.subr.bf16.mxu0 0
    %625 = vmatpush1.bf16.msra.mxu0 0
    %626 = vmatprep.subr.bf16.mxu0 0
    %627 = vmatpush1.bf16.msra.mxu0 0
    %628 = vmatprep.subr.bf16.mxu0 0
    %629 = vmatpush1.bf16.msra.mxu0 0
    %630 = vmatprep.subr.bf16.mxu0 0
    %631 = vmatpush1.bf16.msra.mxu0 0
    %632 = vmatprep.subr.bf16.mxu0 0
    %633 = vmatpush1.bf16.msra.mxu0 0
    %634 = vmatprep.subr.bf16.mxu0 0
    %635 = vmatpush1.bf16.msra.mxu0 %v616
    %636 = vmatprep.subr.bf16.mxu0 0
    %637 = vmatpush1.bf16.msra.mxu0 %v615
    %638 = vmatprep.subr.bf16.mxu0 0
    %639 = vmatpush2.bf16.msra.mxu0 0
    %640 = vmatprep.subr.bf16.mxu0 0
    %641 = vmatpush2.bf16.msra.mxu0 0
    %642 = vmatprep.subr.bf16.mxu0 0
    %643 = vmatpush2.bf16.msra.mxu0 0
    %644 = vmatprep.subr.bf16.mxu0 0
    %645 = vmatpush2.bf16.msra.mxu0 0
    %646 = vmatprep.subr.bf16.mxu0 0
    %647 = vmatpush2.bf16.msra.mxu0 0
    %648 = vmatprep.subr.bf16.mxu0 0
    %649 = vmatpush2.bf16.msra.mxu0 0
    %650 = vmatprep.subr.bf16.mxu0 0
    %651 = vmatpush2.bf16.msra.mxu0 0
    %652 = vmatprep.subr.bf16.mxu0 0
    %653 = vmatpush2.bf16.msra.mxu0 0
    %654 = vmatprep.mubr.bf16.mxu0 0
    %655 = vmatmul.mubr.bf16.gmra.mxu0 %v620
    %v656 = vpop.f32.mrf.mxu0
    %v657 = vadd.f32 %v606, %v656
    %v658 = vpop.f32.mrf.mxu0
    %v659 = vpop.f32.mrf.mxu0
    %v660 = vadd.f32 %v606, %v659
    %v661 = vpop.f32.mrf.mxu0
    %662 = vdwg.mxu0
    %v663 = vld [vmem:[#allocation5 + $0x20] sm:$0xf]
    %v664 = vld [vmem:[#allocation5 + $0x24] sm:$0xf]
    %v665 = vld [vmem:[#allocation5 + $0x28] sm:$0xf]
    %v666 = vld [vmem:[#allocation5 + $0x2c] sm:$0xf]
    %v667 = vld [vmem:[%s4 + $0x8] sm:$0x1]
    %v668 = vlaneseq
    %v669 = vshrl.u32 %v668, 7
    %v670 = vsub.s32 0, %v669
    %v671 = vrot.slane %v667, %v670
    %v676 = vunpack.c.l.b16 %v52
    %v677 = vunpack.c.l.b16 %v53
    %v678 = vunpack.c.l.b16 %v54
    %v679 = vunpack.c.l.b16 %v55
    %v680 = vpack.c.b16 %v677, %v676
    %v681 = vpack.c.b16 %v679, %v678
    %v686 = vunpack.c.l.b16 %v663
    %v687 = vunpack.c.l.b16 %v664
    %v688 = vunpack.c.l.b16 %v665
    %v689 = vunpack.c.l.b16 %v666
    %v690 = vpack.c.b16 %v687, %v686
    %v691 = vpack.c.b16 %v689, %v688
    %v695 = vsel %vm64, %v680, 0
    %v698 = vsel %vm64, %v681, 0
    %700 = vmatprep.subr.bf16.mxu0 0
    %701 = vmatpush1.bf16.msra.mxu0 0
    %702 = vmatprep.subr.bf16.mxu0 0
    %703 = vmatpush1.bf16.msra.mxu0 0
    %704 = vmatprep.subr.bf16.mxu0 0
    %705 = vmatpush1.bf16.msra.mxu0 0
    %706 = vmatprep.subr.bf16.mxu0 0
    %707 = vmatpush1.bf16.msra.mxu0 0
    %708 = vmatprep.subr.bf16.mxu0 0
    %709 = vmatpush1.bf16.msra.mxu0 0
    %710 = vmatprep.subr.bf16.mxu0 0
    %711 = vmatpush1.bf16.msra.mxu0 0
    %712 = vmatprep.subr.bf16.mxu0 0
    %713 = vmatpush1.bf16.msra.mxu0 %v691
    %714 = vmatprep.subr.bf16.mxu0 0
    %715 = vmatpush1.bf16.msra.mxu0 %v690
    %716 = vmatprep.subr.bf16.mxu0 0
    %717 = vmatpush2.bf16.msra.mxu0 0
    %718 = vmatprep.subr.bf16.mxu0 0
    %719 = vmatpush2.bf16.msra.mxu0 0
    %720 = vmatprep.subr.bf16.mxu0 0
    %721 = vmatpush2.bf16.msra.mxu0 0
    %722 = vmatprep.subr.bf16.mxu0 0
    %723 = vmatpush2.bf16.msra.mxu0 0
    %724 = vmatprep.subr.bf16.mxu0 0
    %725 = vmatpush2.bf16.msra.mxu0 0
    %726 = vmatprep.subr.bf16.mxu0 0
    %727 = vmatpush2.bf16.msra.mxu0 0
    %728 = vmatprep.subr.bf16.mxu0 0
    %729 = vmatpush2.bf16.msra.mxu0 0
    %730 = vmatprep.subr.bf16.mxu0 0
    %731 = vmatpush2.bf16.msra.mxu0 0
    %732 = vmatprep.mubr.bf16.mxu0 0
    %733 = vmatmul.mubr.bf16.gmra.mxu0 %v695
    %v734 = vpop.f32.mrf.mxu0
    %v735 = vadd.f32 %v671, %v734
    %v736 = vpop.f32.mrf.mxu0
    %v737 = vpop.f32.mrf.mxu0
    %v738 = vadd.f32 %v671, %v737
    %v739 = vpop.f32.mrf.mxu0
    %740 = vmatprep.mubr.bf16.mxu0 0
    %741 = vmatmul.mubr.bf16.gmra.mxu0 %v698
    %v742 = vpop.f32.mrf.mxu0
    %v743 = vadd.f32 %v671, %v742
    %v744 = vpop.f32.mrf.mxu0
    %v745 = vpop.f32.mrf.mxu0
    %v746 = vadd.f32 %v671, %v745
    %v747 = vpop.f32.mrf.mxu0
    %748 = vdwg.mxu0
    %v749 = vpack.c.bf16 %v738, %v735
    %v750 = vpack.c.bf16 %v746, %v743
    %v751 = vmul.f32 %v657, %v56
    %v752 = vmul.f32 %v660, %v57
    %v753 = vmul.f32 %v657, %v58
    %v754 = vmul.f32 %v660, %v59
    %v755 = vmul.f32 %v657, %v60
    %v756 = vmul.f32 %v660, %v61
    %v757 = vmul.f32 %v657, %v62
    %v758 = vmul.f32 %v660, %v63
    %v759 = vpack.c.bf16 %v752, %v751
    %v760 = vpack.c.bf16 %v754, %v753
    %v761 = vpack.c.bf16 %v756, %v755
    %v762 = vpack.c.bf16 %v758, %v757
    %763 = vrot.lane.b32.xlu0 %v56, 80
    %v764 = vpop.permute.xlu0 %763
    %765 = vrot.lane.b32.xlu0 %v57, 80
    %v766 = vpop.permute.xlu0 %765
    %767 = vrot.lane.b32.xlu0 %v58, 80
    %v768 = vpop.permute.xlu0 %767
    %769 = vrot.lane.b32.xlu0 %v59, 80
    %v770 = vpop.permute.xlu0 %769
    %771 = vrot.lane.b32.xlu0 %v60, 80
    %v772 = vpop.permute.xlu0 %771
    %773 = vrot.lane.b32.xlu0 %v61, 80
    %v774 = vpop.permute.xlu0 %773
    %775 = vrot.lane.b32.xlu0 %v62, 80
    %v776 = vpop.permute.xlu0 %775
    %777 = vrot.lane.b32.xlu0 %v63, 80
    %v778 = vpop.permute.xlu0 %777
    %v788 = vsel %vm64, %v759, 0
    %v791 = vsel %vm64, %v760, 0
    %v794 = vsel %vm64, %v761, 0
    %v797 = vsel %vm64, %v762, 0
    %v800 = vsel %vm64, %v749, 0
    %v803 = vsel %vm64, %v750, 0
    %805 = vmatprep.subr.bf16.mxu0 0
    %806 = vmatpush1.bf16.xpose.msra.mxu0 0
    %807 = vmatprep.subr.bf16.mxu0 0
    %808 = vmatpush1.bf16.xpose.msra.mxu0 0
    %809 = vmatprep.subr.bf16.mxu0 0
    %810 = vmatpush1.bf16.xpose.msra.mxu0 0
    %811 = vmatprep.subr.bf16.mxu0 0
    %812 = vmatpush1.bf16.xpose.msra.mxu0 0
    %813 = vmatprep.subr.bf16.mxu0 0
    %814 = vmatpush1.bf16.xpose.msra.mxu0 0
    %815 = vmatprep.subr.bf16.mxu0 0
    %816 = vmatpush1.bf16.xpose.msra.mxu0 0
    %817 = vmatprep.subr.bf16.mxu0 0
    %818 = vmatpush1.bf16.xpose.msra.mxu0 %v803
    %819 = vmatprep.subr.bf16.mxu0 0
    %820 = vmatpush1.bf16.xpose.msra.mxu0 %v800
    %821 = vmatprep.subr.bf16.mxu0 0
    %822 = vmatpush2.bf16.xpose.msra.mxu0 0
    %823 = vmatprep.subr.bf16.mxu0 0
    %824 = vmatpush2.bf16.xpose.msra.mxu0 0
    %825 = vmatprep.subr.bf16.mxu0 0
    %826 = vmatpush2.bf16.xpose.msra.mxu0 0
    %827 = vmatprep.subr.bf16.mxu0 0
    %828 = vmatpush2.bf16.xpose.msra.mxu0 0
    %829 = vmatprep.subr.bf16.mxu0 0
    %830 = vmatpush2.bf16.xpose.msra.mxu0 0
    %831 = vmatprep.subr.bf16.mxu0 0
    %832 = vmatpush2.bf16.xpose.msra.mxu0 0
    %833 = vmatprep.subr.bf16.mxu0 0
    %834 = vmatpush2.bf16.xpose.msra.mxu0 0
    %835 = vmatprep.subr.bf16.mxu0 0
    %836 = vmatpush2.bf16.xpose.msra.mxu0 0
    %837 = vmatprep.mubr.bf16.mxu0 0
    %838 = vmatmul.mubr.bf16.gmra.mxu0 %v788
    %v839 = vpop.f32.mrf.mxu0
    %v840 = vadd.f32 %v764, %v839
    %v841 = vpop.f32.mrf.mxu0
    %v842 = vpop.f32.mrf.mxu0
    %v843 = vadd.f32 %v766, %v842
    %v844 = vpop.f32.mrf.mxu0
    %845 = vmatprep.mubr.bf16.mxu0 0
    %846 = vmatmul.mubr.bf16.gmra.mxu0 %v791
    %v847 = vpop.f32.mrf.mxu0
    %v848 = vadd.f32 %v768, %v847
    %v849 = vpop.f32.mrf.mxu0
    %v850 = vpop.f32.mrf.mxu0
    %v851 = vadd.f32 %v770, %v850
    %v852 = vpop.f32.mrf.mxu0
    %853 = vmatprep.mubr.bf16.mxu0 0
    %854 = vmatmul.mubr.bf16.gmra.mxu0 %v794
    %v855 = vpop.f32.mrf.mxu0
    %v856 = vadd.f32 %v772, %v855
    %v857 = vpop.f32.mrf.mxu0
    %v858 = vpop.f32.mrf.mxu0
    %v859 = vadd.f32 %v774, %v858
    %v860 = vpop.f32.mrf.mxu0
    %861 = vmatprep.mubr.bf16.mxu0 0
    %862 = vmatmul.mubr.bf16.gmra.mxu0 %v797
    %v863 = vpop.f32.mrf.mxu0
    %v864 = vadd.f32 %v776, %v863
    %v865 = vpop.f32.mrf.mxu0
    %v866 = vpop.f32.mrf.mxu0
    %v867 = vadd.f32 %v778, %v866
    %v868 = vpop.f32.mrf.mxu0
    %869 = vdwg.mxu0
    %v870 = vsel %vm64, %v840, -inf
    %871 = vmax.xlane.f32.xlu0 %v870
    %v872 = vpop.xlane.xlu0 %871
    %v873 = vsel %vm64, %v843, -inf
    %874 = vmax.xlane.f32.xlu0 %v873
    %v875 = vpop.xlane.xlu0 %874
    %v876 = vsel %vm64, %v848, -inf
    %877 = vmax.xlane.f32.xlu0 %v876
    %v878 = vpop.xlane.xlu0 %877
    %v879 = vsel %vm64, %v851, -inf
    %880 = vmax.xlane.f32.xlu0 %v879
    %v881 = vpop.xlane.xlu0 %880
    %v882 = vsel %vm64, %v856, -inf
    %883 = vmax.xlane.f32.xlu0 %v882
    %v884 = vpop.xlane.xlu0 %883
    %v885 = vsel %vm64, %v859, -inf
    %886 = vmax.xlane.f32.xlu0 %v885
    %v887 = vpop.xlane.xlu0 %886
    %v888 = vsel %vm64, %v864, -inf
    %889 = vmax.xlane.f32.xlu0 %v888
    %v890 = vpop.xlane.xlu0 %889
    %v891 = vsel %vm64, %v867, -inf
    %892 = vmax.xlane.f32.xlu0 %v891
    %v893 = vpop.xlane.xlu0 %892
    %v894 = vsub.f32 %v840, %v872
    %v895 = vsub.f32 %v843, %v875
    %v896 = vsub.f32 %v848, %v878
    %v897 = vsub.f32 %v851, %v881
    %v898 = vsub.f32 %v856, %v884
    %v899 = vsub.f32 %v859, %v887
    %v900 = vsub.f32 %v864, %v890
    %v901 = vsub.f32 %v867, %v893
    %v902 = vmul.f32 %v894, 1.442695
    %v903 = vpow.pop %v902
    %v904 = vmul.f32 %v895, 1.442695
    %v905 = vpow.pop %v904
    %v906 = vmul.f32 %v896, 1.442695
    %v907 = vpow.pop %v906
    %v908 = vmul.f32 %v897, 1.442695
    %v909 = vpow.pop %v908
    %v910 = vmul.f32 %v898, 1.442695
    %v911 = vpow.pop %v910
    %v912 = vmul.f32 %v899, 1.442695
    %v913 = vpow.pop %v912
    %v914 = vmul.f32 %v900, 1.442695
    %v915 = vpow.pop %v914
    %v916 = vmul.f32 %v901, 1.442695
    %v917 = vpow.pop %v916
    %v918 = vsel %vm64, %v903, 0.0
    %919 = vadd.xlane.f32.xlu0 %v918
    %v920 = vpop.xlane.xlu0 %919
    %v921 = vsel %vm64, %v905, 0.0
    %922 = vadd.xlane.f32.xlu0 %v921
    %v923 = vpop.xlane.xlu0 %922
    %v924 = vsel %vm64, %v907, 0.0
    %925 = vadd.xlane.f32.xlu0 %v924
    %v926 = vpop.xlane.xlu0 %925
    %v927 = vsel %vm64, %v909, 0.0
    %928 = vadd.xlane.f32.xlu0 %v927
    %v929 = vpop.xlane.xlu0 %928
    %v930 = vsel %vm64, %v911, 0.0
    %931 = vadd.xlane.f32.xlu0 %v930
    %v932 = vpop.xlane.xlu0 %931
    %v933 = vsel %vm64, %v913, 0.0
    %934 = vadd.xlane.f32.xlu0 %v933
    %v935 = vpop.xlane.xlu0 %934
    %v936 = vsel %vm64, %v915, 0.0
    %937 = vadd.xlane.f32.xlu0 %v936
    %v938 = vpop.xlane.xlu0 %937
    %v939 = vsel %vm64, %v917, 0.0
    %940 = vadd.xlane.f32.xlu0 %v939
    %v941 = vpop.xlane.xlu0 %940
    %v942 = vrcp.pop %v920
    %v943 = vrcp.pop %v923
    %v944 = vrcp.pop %v926
    %v945 = vrcp.pop %v929
    %v946 = vrcp.pop %v932
    %v947 = vrcp.pop %v935
    %v948 = vrcp.pop %v938
    %v949 = vrcp.pop %v941
    %v950 = vmul.f32 %v903, %v942
    %v951 = vmul.f32 %v905, %v943
    %v952 = vmul.f32 %v907, %v944
    %v953 = vmul.f32 %v909, %v945
    %v954 = vmul.f32 %v911, %v946
    %v955 = vmul.f32 %v913, %v947
    %v956 = vmul.f32 %v915, %v948
    %v957 = vmul.f32 %v917, %v949
    %v958 = vpack.c.bf16 %v951, %v950
    %v959 = vpack.c.bf16 %v953, %v952
    %v960 = vpack.c.bf16 %v955, %v954
    %v961 = vpack.c.bf16 %v957, %v956
    %964 = vrot.lane.b32.xlu0 %v749, 96
    %v965 = vpop.permute.xlu0 %964
    %966 = vrot.lane.b32.xlu0 %v750, 96
    %v967 = vpop.permute.xlu0 %966
    %v971 = vsel %vm64, %v958, 0
    %v974 = vsel %vm64, %v959, 0
    %v977 = vsel %vm64, %v960, 0
    %v980 = vsel %vm64, %v961, 0
    %982 = vmatprep.subr.bf16.mxu0 0
    %983 = vmatpush1.bf16.msra.mxu0 0
    %984 = vmatprep.subr.bf16.mxu0 0
    %985 = vmatpush1.bf16.msra.mxu0 0
    %986 = vmatprep.subr.bf16.mxu0 0
    %987 = vmatpush1.bf16.msra.mxu0 0
    %988 = vmatprep.subr.bf16.mxu0 0
    %989 = vmatpush1.bf16.msra.mxu0 0
    %990 = vmatprep.subr.bf16.mxu0 0
    %991 = vmatpush1.bf16.msra.mxu0 0
    %992 = vmatprep.subr.bf16.mxu0 0
    %993 = vmatpush1.bf16.msra.mxu0 0
    %994 = vmatprep.subr.bf16.mxu0 0
    %995 = vmatpush1.bf16.msra.mxu0 %v967
    %996 = vmatprep.subr.bf16.mxu0 0
    %997 = vmatpush1.bf16.msra.mxu0 %v965
    %998 = vmatprep.subr.bf16.mxu0 0
    %999 = vmatpush2.bf16.msra.mxu0 0
    %1000 = vmatprep.subr.bf16.mxu0 0
    %1001 = vmatpush2.bf16.msra.mxu0 0
    %1002 = vmatprep.subr.bf16.mxu0 0
    %1003 = vmatpush2.bf16.msra.mxu0 0
    %1004 = vmatprep.subr.bf16.mxu0 0
    %1005 = vmatpush2.bf16.msra.mxu0 0
    %1006 = vmatprep.subr.bf16.mxu0 0
    %1007 = vmatpush2.bf16.msra.mxu0 0
    %1008 = vmatprep.subr.bf16.mxu0 0
    %1009 = vmatpush2.bf16.msra.mxu0 0
    %1010 = vmatprep.subr.bf16.mxu0 0
    %1011 = vmatpush2.bf16.msra.mxu0 0
    %1012 = vmatprep.subr.bf16.mxu0 0
    %1013 = vmatpush2.bf16.msra.mxu0 0
    %1014 = vmatprep.mubr.bf16.mxu0 0
    %1015 = vmatmul.mubr.bf16.gmra.mxu0 %v971
    %v1016 = vpop.f32.mrf.mxu0
    %v1017 = vadd.f32 0.0, %v1016
    %v1018 = vpop.f32.mrf.mxu0
    %v1019 = vpop.f32.mrf.mxu0
    %v1020 = vadd.f32 0.0, %v1019
    %v1021 = vpop.f32.mrf.mxu0
    %1022 = vmatprep.mubr.bf16.mxu0 0
    %1023 = vmatmul.mubr.bf16.gmra.mxu0 %v974
    %v1024 = vpop.f32.mrf.mxu0
    %v1025 = vadd.f32 0.0, %v1024
    %v1026 = vpop.f32.mrf.mxu0
    %v1027 = vpop.f32.mrf.mxu0
    %v1028 = vadd.f32 0.0, %v1027
    %v1029 = vpop.f32.mrf.mxu0
    %1030 = vmatprep.mubr.bf16.mxu0 0
    %1031 = vmatmul.mubr.bf16.gmra.mxu0 %v977
    %v1032 = vpop.f32.mrf.mxu0
    %v1033 = vadd.f32 0.0, %v1032
    %v1034 = vpop.f32.mrf.mxu0
    %v1035 = vpop.f32.mrf.mxu0
    %v1036 = vadd.f32 0.0, %v1035
    %v1037 = vpop.f32.mrf.mxu0
    %1038 = vmatprep.mubr.bf16.mxu0 0
    %1039 = vmatmul.mubr.bf16.gmra.mxu0 %v980
    %v1040 = vpop.f32.mrf.mxu0
    %v1041 = vadd.f32 0.0, %v1040
    %v1042 = vpop.f32.mrf.mxu0
    %v1043 = vpop.f32.mrf.mxu0
    %v1044 = vadd.f32 0.0, %v1043
    %v1045 = vpop.f32.mrf.mxu0
    %1046 = vdwg.mxu0
    %v1047 = vmul.f32 %v1017, %v56
    %v1048 = vmul.f32 %v1020, %v57
    %v1049 = vmul.f32 %v1025, %v58
    %v1050 = vmul.f32 %v1028, %v59
    %v1051 = vmul.f32 %v1033, %v60
    %v1052 = vmul.f32 %v1036, %v61
    %v1053 = vmul.f32 %v1041, %v62
    %v1054 = vmul.f32 %v1044, %v63
    %v1055 = vadd.f32 %v1047, %v1049
    %v1056 = vadd.f32 %v1048, %v1050
    %v1057 = vadd.f32 %v1055, %v1051
    %v1058 = vadd.f32 %v1056, %v1052
    %v1059 = vadd.f32 %v1057, %v1053
    %v1060 = vadd.f32 %v1058, %v1054
    %v1061 = vld [vmem:[#allocation5 + $0x40] sm:$0xf]
    %v1062 = vld [vmem:[#allocation5 + $0x44] sm:$0xf]
    %v1063 = vld [vmem:[#allocation5 + $0x48] sm:$0xf]
    %v1064 = vld [vmem:[#allocation5 + $0x4c] sm:$0xf]
    %v1065 = vpack.c.bf16 %v1060, %v1059
    %v1070 = vunpack.c.l.b16 %v1061
    %v1071 = vunpack.c.l.b16 %v1062
    %v1072 = vunpack.c.l.b16 %v1063
    %v1073 = vunpack.c.l.b16 %v1064
    %v1074 = vpack.c.b16 %v1071, %v1070
    %v1075 = vpack.c.b16 %v1073, %v1072
    %v1079 = vsel %vm64, %v1065, 0
    %1081 = vmatprep.subr.bf16.mxu0 0
    %1082 = vmatpush1.bf16.msra.mxu0 0
    %1083 = vmatprep.subr.bf16.mxu0 0
    %1084 = vmatpush1.bf16.msra.mxu0 0
    %1085 = vmatprep.subr.bf16.mxu0 0
    %1086 = vmatpush1.bf16.msra.mxu0 0
    %1087 = vmatprep.subr.bf16.mxu0 0
    %1088 = vmatpush1.bf16.msra.mxu0 0
    %1089 = vmatprep.subr.bf16.mxu0 0
    %1090 = vmatpush1.bf16.msra.mxu0 0
    %1091 = vmatprep.subr.bf16.mxu0 0
    %1092 = vmatpush1.bf16.msra.mxu0 0
    %1093 = vmatprep.subr.bf16.mxu0 0
    %1094 = vmatpush1.bf16.msra.mxu0 %v1075
    %1095 = vmatprep.subr.bf16.mxu0 0
    %1096 = vmatpush1.bf16.msra.mxu0 %v1074
    %1097 = vmatprep.subr.bf16.mxu0 0
    %1098 = vmatpush2.bf16.msra.mxu0 0
    %1099 = vmatprep.subr.bf16.mxu0 0
    %1100 = vmatpush2.bf16.msra.mxu0 0
    %1101 = vmatprep.subr.bf16.mxu0 0
    %1102 = vmatpush2.bf16.msra.mxu0 0
    %1103 = vmatprep.subr.bf16.mxu0 0
    %1104 = vmatpush2.bf16.msra.mxu0 0
    %1105 = vmatprep.subr.bf16.mxu0 0
    %1106 = vmatpush2.bf16.msra.mxu0 0
    %1107 = vmatprep.subr.bf16.mxu0 0
    %1108 = vmatpush2.bf16.msra.mxu0 0
    %1109 = vmatprep.subr.bf16.mxu0 0
    %1110 = vmatpush2.bf16.msra.mxu0 0
    %1111 = vmatprep.subr.bf16.mxu0 0
    %1112 = vmatpush2.bf16.msra.mxu0 0
    %1113 = vmatprep.mubr.bf16.mxu0 0
    %1114 = vmatmul.mubr.bf16.gmra.mxu0 %v1079
    %v1115 = vpop.f32.mrf.mxu0
    %v1116 = vadd.f32 0.0, %v1115
    %v1117 = vpop.f32.mrf.mxu0
    %v1118 = vpop.f32.mrf.mxu0
    %v1119 = vadd.f32 0.0, %v1118
    %v1120 = vpop.f32.mrf.mxu0
    %1121 = vdwg.mxu0
    %v1122 = vadd.f32 %v555, %v1116
    %v1123 = vadd.f32 %v556, %v1119
    %v1124 = vld [vmem:[%s4 + $0xa] sm:$0x1]
    %v1125 = vlaneseq
    %v1126 = vshrl.u32 %v1125, 7
    %v1127 = vsub.s32 0, %v1126
    %v1128 = vrot.slane %v1124, %v1127
    %v1129 = vadd.f32 %v1122, %v1128
    %v1130 = vadd.f32 %v1123, %v1128
    %v1131 = vsel %vm64, %v1129, 0.0
    %1132 = vadd.xlane.f32.xlu0 %v1131
    %v1133 = vpop.xlane.xlu0 %1132
    %v1134 = vsel %vm64, %v1130, 0.0
    %1135 = vadd.xlane.f32.xlu0 %v1134
    %v1136 = vpop.xlane.xlu0 %1135
    %v1137 = vmul.f32 %v1133, %v71
    %v1138 = vmul.f32 %v1136, %v71
    %v1139 = vsub.f32 %v1129, %v1137
    %v1140 = vsub.f32 %v1130, %v1138
    %v1141 = vmul.f32 %v1139, %v1139
    %v1142 = vmul.f32 %v1140, %v1140
    %v1143 = vsel %vm64, %v1141, 0.0
    %1144 = vadd.xlane.f32.xlu0 %v1143
    %v1145 = vpop.xlane.xlu0 %1144
    %v1146 = vsel %vm64, %v1142, 0.0
    %1147 = vadd.xlane.f32.xlu0 %v1146
    %v1148 = vpop.xlane.xlu0 %1147
    %v1149 = vmul.f32 %v1145, %v71
    %v1150 = vmul.f32 %v1148, %v71
    %v1151 = vadd.f32 %v1149, 1e-05
    %v1152 = vadd.f32 %v1150, 1e-05
    %v1153 = vrsqrt.pop %v1151
    %v1154 = vrsqrt.pop %v1152
    %v1155 = vmul.f32 %v1139, %v1153
    %v1156 = vmul.f32 %v1140, %v1154
    %v1157 = vld [vmem:[%s4 + $0x4] sm:$0x1]
    %v1158 = vlaneseq
    %v1159 = vshrl.u32 %v1158, 7
    %v1160 = vsub.s32 0, %v1159
    %v1161 = vrot.slane %v1157, %v1160
    %v1162 = vmul.f32 %v1155, %v1161
    %v1163 = vmul.f32 %v1156, %v1161
    %v1164 = vld [vmem:[%s4 + $0x5] sm:$0x1]
    %v1165 = vlaneseq
    %v1166 = vshrl.u32 %v1165, 7
    %v1167 = vsub.s32 0, %v1166
    %v1168 = vrot.slane %v1164, %v1167
    %v1169 = vadd.f32 %v1162, %v1168
    %v1170 = vadd.f32 %v1163, %v1168
    %v1171 = vld [vmem:[#allocation5 + $0x50] sm:$0xf]
    %v1172 = vld [vmem:[#allocation5 + $0x54] sm:$0xf]
    %v1173 = vld [vmem:[#allocation5 + $0x58] sm:$0xf]
    %v1174 = vld [vmem:[#allocation5 + $0x5c] sm:$0xf]
    %v1175 = vpack.c.bf16 %v1170, %v1169
    %v1176 = vld [vmem:[%s4 + $0xb] sm:$0x1]
    %v1177 = vlaneseq
    %v1178 = vshrl.u32 %v1177, 7
    %v1179 = vsub.s32 0, %v1178
    %v1180 = vrot.slane %v1176, %v1179
    %v1185 = vunpack.c.l.b16 %v1171
    %v1186 = vunpack.c.l.b16 %v1172
    %v1187 = vunpack.c.l.b16 %v1173
    %v1188 = vunpack.c.l.b16 %v1174
    %v1189 = vpack.c.b16 %v1186, %v1185
    %v1190 = vpack.c.b16 %v1188, %v1187
    %v1194 = vsel %vm64, %v1175, 0
    %1196 = vmatprep.subr.bf16.mxu0 0
    %1197 = vmatpush1.bf16.msra.mxu0 0
    %1198 = vmatprep.subr.bf16.mxu0 0
    %1199 = vmatpush1.bf16.msra.mxu0 0
    %1200 = vmatprep.subr.bf16.mxu0 0
    %1201 = vmatpush1.bf16.msra.mxu0 0
    %1202 = vmatprep.subr.bf16.mxu0 0
    %1203 = vmatpush1.bf16.msra.mxu0 0
    %1204 = vmatprep.subr.bf16.mxu0 0
    %1205 = vmatpush1.bf16.msra.mxu0 0
    %1206 = vmatprep.subr.bf16.mxu0 0
    %1207 = vmatpush1.bf16.msra.mxu0 0
    %1208 = vmatprep.subr.bf16.mxu0 0
    %1209 = vmatpush1.bf16.msra.mxu0 %v1190
    %1210 = vmatprep.subr.bf16.mxu0 0
    %1211 = vmatpush1.bf16.msra.mxu0 %v1189
    %1212 = vmatprep.subr.bf16.mxu0 0
    %1213 = vmatpush2.bf16.msra.mxu0 0
    %1214 = vmatprep.subr.bf16.mxu0 0
    %1215 = vmatpush2.bf16.msra.mxu0 0
    %1216 = vmatprep.subr.bf16.mxu0 0
    %1217 = vmatpush2.bf16.msra.mxu0 0
    %1218 = vmatprep.subr.bf16.mxu0 0
    %1219 = vmatpush2.bf16.msra.mxu0 0
    %1220 = vmatprep.subr.bf16.mxu0 0
    %1221 = vmatpush2.bf16.msra.mxu0 0
    %1222 = vmatprep.subr.bf16.mxu0 0
    %1223 = vmatpush2.bf16.msra.mxu0 0
    %1224 = vmatprep.subr.bf16.mxu0 0
    %1225 = vmatpush2.bf16.msra.mxu0 0
    %1226 = vmatprep.subr.bf16.mxu0 0
    %1227 = vmatpush2.bf16.msra.mxu0 0
    %1228 = vmatprep.mubr.bf16.mxu0 0
    %1229 = vmatmul.mubr.bf16.gmra.mxu0 %v1194
    %v1230 = vpop.f32.mrf.mxu0
    %v1231 = vadd.f32 %v1180, %v1230
    %v1232 = vpop.f32.mrf.mxu0
    %v1233 = vpop.f32.mrf.mxu0
    %v1234 = vadd.f32 %v1180, %v1233
    %v1235 = vpop.f32.mrf.mxu0
    %1236 = vdwg.mxu0
    %v1237 = vmax.f32 %v1231, 0.0
    %v1238 = vmax.f32 %v1234, 0.0
    %v1239 = vld [vmem:[#allocation5 + $0x60] sm:$0xf]
    %v1240 = vld [vmem:[#allocation5 + $0x64] sm:$0xf]
    %v1241 = vld [vmem:[#allocation5 + $0x68] sm:$0xf]
    %v1242 = vld [vmem:[#allocation5 + $0x6c] sm:$0xf]
    %v1243 = vld [vmem:[#allocation5 + $0x70] sm:$0xf]
    %v1244 = vld [vmem:[#allocation5 + $0x74] sm:$0xf]
    %v1245 = vld [vmem:[#allocation5 + $0x78] sm:$0xf]
    %v1246 = vld [vmem:[#allocation5 + $0x7c] sm:$0xf]
    %v1247 = vpack.c.bf16 %v1238, %v1237
    %v1256 = vunpack.c.l.b16 %v1239
    %v1257 = vunpack.c.l.b16 %v1240
    %v1258 = vunpack.c.l.b16 %v1241
    %v1259 = vunpack.c.l.b16 %v1242
    %v1260 = vunpack.c.l.b16 %v1243
    %v1261 = vunpack.c.l.b16 %v1244
    %v1262 = vunpack.c.l.b16 %v1245
    %v1263 = vunpack.c.l.b16 %v1246
    %v1264 = vpack.c.b16 %v1257, %v1256
    %v1265 = vpack.c.b16 %v1259, %v1258
    %v1266 = vpack.c.b16 %v1261, %v1260
    %v1267 = vpack.c.b16 %v1263, %v1262
    %vm1272 = vcmask 523264
    %v1274 = vsel %vm1272, %v1247, 0
    %1276 = vmatprep.subr.bf16.mxu0 0
    %1277 = vmatpush1.bf16.msra.mxu0 0
    %1278 = vmatprep.subr.bf16.mxu0 0
    %1279 = vmatpush1.bf16.msra.mxu0 0
    %1280 = vmatprep.subr.bf16.mxu0 0
    %1281 = vmatpush1.bf16.msra.mxu0 0
    %1282 = vmatprep.subr.bf16.mxu0 0
    %1283 = vmatpush1.bf16.msra.mxu0 0
    %1284 = vmatprep.subr.bf16.mxu0 0
    %1285 = vmatpush1.bf16.msra.mxu0 %v1267
    %1286 = vmatprep.subr.bf16.mxu0 0
    %1287 = vmatpush1.bf16.msra.mxu0 %v1266
    %1288 = vmatprep.subr.bf16.mxu0 0
    %1289 = vmatpush1.bf16.msra.mxu0 %v1265
    %1290 = vmatprep.subr.bf16.mxu0 0
    %1291 = vmatpush1.bf16.msra.mxu0 %v1264
    %1292 = vmatprep.subr.bf16.mxu0 0
    %1293 = vmatpush2.bf16.msra.mxu0 0
    %1294 = vmatprep.subr.bf16.mxu0 0
    %1295 = vmatpush2.bf16.msra.mxu0 0
    %1296 = vmatprep.subr.bf16.mxu0 0
    %1297 = vmatpush2.bf16.msra.mxu0 0
    %1298 = vmatprep.subr.bf16.mxu0 0
    %1299 = vmatpush2.bf16.msra.mxu0 0
    %1300 = vmatprep.subr.bf16.mxu0 0
    %1301 = vmatpush2.bf16.msra.mxu0 0
    %1302 = vmatprep.subr.bf16.mxu0 0
    %1303 = vmatpush2.bf16.msra.mxu0 0
    %1304 = vmatprep.subr.bf16.mxu0 0
    %1305 = vmatpush2.bf16.msra.mxu0 0
    %1306 = vmatprep.subr.bf16.mxu0 0
    %1307 = vmatpush2.bf16.msra.mxu0 0
    %1308 = vmatprep.mubr.bf16.mxu0 0
    %1309 = vmatmul.mubr.bf16.gmra.mxu0 %v1274
    %v1310 = vpop.f32.mrf.mxu0
    %v1311 = vadd.f32 0.0, %v1310
    %v1312 = vpop.f32.mrf.mxu0
    %v1313 = vpop.f32.mrf.mxu0
    %v1314 = vadd.f32 0.0, %v1313
    %v1315 = vpop.f32.mrf.mxu0
    %1316 = vdwg.mxu0
    %v1317 = vadd.f32 %v1129, %v1311
    %v1318 = vadd.f32 %v1130, %v1314
    %v1319 = vld [vmem:[%s4 + $0xc] sm:$0x1]
    %v1320 = vlaneseq
    %v1321 = vshrl.u32 %v1320, 7
    %v1322 = vsub.s32 0, %v1321
    %v1323 = vrot.slane %v1319, %v1322
    %v1324 = vadd.f32 %v1317, %v1323
    %v1325 = vadd.f32 %v1318, %v1323
    %1326 = vst.msk [vmem:[#allocation7] sm:$0xff] %vm64, %v1324
    %1327 = vst.msk [vmem:[#allocation7 + $0x8] sm:$0xff] %vm64, %v1325
    // Predicated region
    $region30: #{decoder_block_forward.1} parent=1 // pred_check
      _
    $region31: #{decoder_block_forward.1} parent=1 // pred_check_branch
      %1329 = sbr.rel (0) target = $region33
    $region32: #{decoder_block_forward.1} parent=1 // pred_region
      %s1331 = ssub.s32 256, 256
      %1332 = vsyncadd [#allocation4], %s1331
      %s1333 = sshll.u32 [#allocation7], 4
      %s1334 = int_to_ptr.vmem [resolvable:$true] %s1333
      %1339 = dma.vmem_to_hbm [thread:$0]  %s1334, 256, %s5, [#allocation4], 128, 128, 8
    $region33: #{decoder_block_forward.1} parent=1 // pred_fallthru
      _
    // Predicated region
    $region34: #{decoder_block_forward.1} parent=1 // pred_check
      _
    $region35: #{decoder_block_forward.1} parent=1 // pred_check_branch
      %1341 = sbr.rel (0) target = $region37
    $region36: #{decoder_block_forward.1} parent=1 // pred_region
      %1342 = dma.done [#allocation4], 256
    $region37: #{decoder_block_forward.1} parent=1 // pred_fallthru
      _
    %1343 = vsyncpa [#allocation3], 1
    %1344 = vsyncpa [#allocation6], 1
    %1345 = vsyncpa [#allocation4], 1

</llo_original>
